<compile_context>
chip_gen: v6e
topology: v6e:2x2x1
jax: 0.10.0
libtpu: 0.0.40
codegen_flags: <defaults>
</compile_context>

<pallas_src>
import functools
import math

import jax
import jax.numpy as jnp
from jax.experimental import pallas as pl
from jax.experimental.pallas import tpu as pltpu


def _qsa_kernel(batch, xt_ref, x3_ref, w1_ref, b1_ref, w2_ref, b2_ref, o_ref):
    """One row tile of R = (q-positions in tile) * batch rows, question-position-major.

    xt_ref: [R, H]       bf16  ques_feat rows in (q_pos, batch) order (FCNet matmul operand)
    x3_ref: [R//T, T, H] f32   matching batches of ques_feat in natural order (bmm operand)
    w1_ref: [H, H]       bf16  effective FCNet([H, H]) weight, (in, out) layout
    b1_ref: [1, H]       f32
    w2_ref: [1, H]       f32   Linear(H, 1) weight row
    b2_ref: [1, 1]       f32   SMEM scalar
    o_ref : [R//T, H]    f32
    """
    f32 = jnp.float32
    R, H = xt_ref.shape
    RB, T, _ = x3_ref.shape          # output rows in this tile, q_len
    GT = R // batch                  # whole softmax groups (question positions) in this tile

    # FCNet([H, H]) + tanh: bf16 MXU matmul, f32 accumulate & epilogue.
    h = jnp.dot(xt_ref[...], w1_ref[...], preferred_element_type=f32) + b1_ref[...]
    h = jnp.tanh(jnp.maximum(h, 0.0))                                  # [R, H] f32

    # FCNet([H, 1]) logit: full-lane VPU multiply + lane reduction.
    logit = jnp.sum(h * w2_ref[...], axis=1, keepdims=True) + b2_ref[0, 0]
    logit = jnp.maximum(logit, 0.0)                                    # [R, 1]

    # Softmax over the batch axis: rows are question-position-major, so every group of
    # `batch` consecutive rows is one complete softmax group -> dense [GT, B] reduction.
    lt = logit.reshape(GT, batch)
    e = jnp.exp(lt - jnp.max(lt, axis=1, keepdims=True))
    w = e / jnp.sum(e, axis=1, keepdims=True)                          # exact normalize, f32

    # PyTorch `.t().view(-1, 1, T)` quirk: the row-major flat order of `w` is already the
    # order torch.bmm consumes; regroup per (output row, question position).
    w_rc = w.reshape(RB, T, 1)

    # torch.bmm(weight, ques_feat): VPU scale + segment-sum over the T question positions.
    o_ref[...] = jnp.sum(w_rc * x3_ref[...], axis=1)                   # [RB, H] f32


def _row_tile(n_rows, batch, q_len):
    """Largest row tile that (a) keeps whole softmax groups (multiple of batch), (b) keeps whole
    output rows with an 8-aligned output sublane block (multiple of q_len*8), (c) respects bf16
    sublane packing (multiple of 16), and divides the total row count.  Falls back to a single
    full-extent block (always legal) for small / odd shapes."""
    base = math.lcm(batch, 16, q_len * 8)
    if n_rows % base != 0:
        return n_rows
    r = base
    while r * 2 <= min(n_rows // 2, 4096) and n_rows % (r * 2) == 0:
        r *= 2
    return r


def question_self_attention(ques_feat, w1, b1, w2, b2):
    """ques_feat: [B, T, H] f32; w1: [H, H] (in, out); b1: [1, H]; w2: [1, H]; b2: [1, 1].

    weight_norm of the FCNet layers is a pure reparametrization and is folded into the
    effective w1/w2 host-side; nn.Dropout is identity at inference.  Returns [B, H]
    (== ques_feat_self_att.view(-1, num_hid))."""
    B, T, H = ques_feat.shape
    N = B * T
    f32 = jnp.float32

    x3 = ques_feat.astype(f32)
    # Question-position-major rows: xt[n] = ques_feat[n % B, n // B].  bf16 halves the HBM
    # stream feeding the dominant MXU matmul (x3 stays f32 for the exact weighted sum).
    xt = jnp.swapaxes(x3, 0, 1).reshape(N, H).astype(jnp.bfloat16)
    # TODO(synk): at production sizes, fold this transposed copy into the logits stage's
    # BlockSpec / a manual DMA instead of materializing an extra copy of x in HBM.

    w1_bf = w1.astype(jnp.bfloat16)
    b1_r = b1.reshape(1, H).astype(f32)
    w2_r = w2.reshape(1, H).astype(f32)
    b2_s = b2.reshape(1, 1).astype(f32)

    R = _row_tile(N, B, T)
    grid = (N // R,)

    # TODO(synk): at production sizes (num_hid~1280, B~512) the lcm-derived tile can exceed
    # v7x's 64 MiB VMEM; switch to a two-stage grid (logits into a tiny [B, T] VMEM scratch,
    # then a natural-order weighted-sum stage with a resident accumulator), set
    # vmem_limit_bytes explicitly, and pad H to a multiple of 128 if it is not already.
    out = pl.pallas_call(
        functools.partial(_qsa_kernel, B),
        grid=grid,
        in_specs=[
            pl.BlockSpec((R, H), lambda i: (i, 0)),             # xt: q-position-major rows
            pl.BlockSpec((R // T, T, H), lambda i: (i, 0, 0)),   # ques_feat batches of this tile
            pl.BlockSpec((H, H), lambda i: (0, 0)),              # W1 (bf16, resident)
            pl.BlockSpec((1, H), lambda i: (0, 0)),              # b1
            pl.BlockSpec((1, H), lambda i: (0, 0)),              # w2 row
            pl.BlockSpec(memory_space=pltpu.MemorySpace.SMEM),   # b2 scalar
        ],
        out_specs=pl.BlockSpec((R // T, H), lambda i: (i, 0)),
        out_shape=jax.ShapeDtypeStruct((B, H), f32),
        compiler_params=pltpu.CompilerParams(
            dimension_semantics=("parallel",)),
    )(xt, x3, w1_bf, b1_r, w2_r, b2_s)
    return out


def _reference(ques_feat, w1, b1, w2, b2):
    """Plain-JAX mirror of the PyTorch forward at HIGHEST precision."""
    B, T, H = ques_feat.shape
    hi = jax.lax.Precision.HIGHEST
    x = ques_feat.reshape(-1, H)
    h = jnp.tanh(jax.nn.relu(jnp.dot(x, w1, precision=hi) + b1))
    atten = jax.nn.relu(jnp.dot(h, w2.T, precision=hi) + b2).reshape(B, T)
    weight = jax.nn.softmax(atten.T, axis=1).reshape(B, 1, T)   # the .t().view quirk
    out = jnp.einsum("bot,bth->boh", weight, ques_feat, precision=hi)
    return out.reshape(-1, H)


if __name__ == "__main__":
    B, T, H = 16, 14, 128        # q_len = 14 per the module docstring; small batch / num_hid
    key = jax.random.PRNGKey(0)
    kx, k1, k2, k3, k4 = jax.random.split(key, 5)
    ques_feat = jax.random.normal(kx, (B, T, H), dtype=jnp.float32)
    w1 = 0.1 * jax.random.normal(k1, (H, H), dtype=jnp.float32)   # effective (in, out) weight
    b1 = 0.1 * jax.random.normal(k2, (1, H), dtype=jnp.float32)
    w2 = 0.1 * jax.random.normal(k3, (1, H), dtype=jnp.float32)   # Linear(H, 1).weight
    b2 = 0.1 * jax.random.normal(k4, (1, 1), dtype=jnp.float32)

    out = jax.block_until_ready(question_self_attention(ques_feat, w1, b1, w2, b2))
    ref = _reference(ques_feat, w1, b1, w2, b2)

    assert out.shape == (B, H)
    # bf16 MXU operands (with f32 accumulation) on the FCNet matmul bound the deviation from
    # the f32-HIGHEST reference at the ~1e-3 level; 2e-2 leaves an order-of-magnitude margin.
    assert jnp.allclose(out, ref, atol=2e-2, rtol=2e-2), "mismatch vs pure-JAX reference"
    print("KERNEL_OK")
</pallas_src>

<mosaic_0001>
module attributes {stable_mosaic.version = 11 : i64} {
  func.func @_qsa_kernel(%arg0: i32, %arg1: memref<112x128xbf16, #tpu.memory_space<vmem>>, %arg2: memref<8x14x128xf32, #tpu.memory_space<vmem>>, %arg3: memref<128x128xbf16, #tpu.memory_space<vmem>>, %arg4: memref<1x128xf32, #tpu.memory_space<vmem>>, %arg5: memref<1x128xf32, #tpu.memory_space<vmem>>, %arg6: memref<1x1xf32, #tpu.memory_space<smem>>, %arg7: memref<8x128xf32, #tpu.memory_space<vmem>>) attributes {dimension_semantics = [#tpu.dimension_semantics<parallel>], iteration_bounds = array<i64: 2>, scalar_prefetch = 0 : i64, scratch_operands = 0 : i64, tpu.core_type = #tpu.core_type<tc>, window_params = [{transform_indices = @transform_0, window_bounds = array<i64: 112, 128>}, {transform_indices = @transform_1, window_bounds = array<i64: 8, 14, 128>}, {pipeline_mode = #tpu.pipeline_mode<synchronous>, transform_indices = @transform_2, window_bounds = array<i64: 128, 128>}, {pipeline_mode = #tpu.pipeline_mode<synchronous>, transform_indices = @transform_3, window_bounds = array<i64: 1, 128>}, {pipeline_mode = #tpu.pipeline_mode<synchronous>, transform_indices = @transform_4, window_bounds = array<i64: 1, 128>}, {transform_indices = @transform_5, window_bounds = array<i64: 1, 1>}, {transform_indices = @transform_6, window_bounds = array<i64: 8, 128>}]} {
    %c0 = arith.constant 0 : index
    %c0_0 = arith.constant 0 : index
    %0 = vector.load %arg1[%c0, %c0_0] : memref<112x128xbf16, #tpu.memory_space<vmem>>, vector<112x128xbf16>
    %c0_1 = arith.constant 0 : index
    %c0_2 = arith.constant 0 : index
    %1 = vector.load %arg3[%c0_1, %c0_2] : memref<128x128xbf16, #tpu.memory_space<vmem>>, vector<128x128xbf16>
    %cst = arith.constant dense<0.000000e+00> : vector<112x128xf32>
    %2 = tpu.matmul %0, %1, %cst {dimension_numbers = #tpu.dot_dimension_numbers<[1], [0], [0], [1], [0, 0, 1, 1], [], []>} : vector<112x128xbf16>, vector<128x128xbf16>, vector<112x128xf32> -> vector<112x128xf32>
    %c0_3 = arith.constant 0 : index
    %c0_4 = arith.constant 0 : index
    %3 = vector.load %arg4[%c0_3, %c0_4] : memref<1x128xf32, #tpu.memory_space<vmem>>, vector<1x128xf32>
    %4 = vector.broadcast %3 : vector<1x128xf32> to vector<112x128xf32>
    %5 = arith.addf %2, %4 : vector<112x128xf32>
    %cst_5 = arith.constant 0.000000e+00 : f32
    %6 = vector.broadcast %cst_5 : f32 to vector<112x128xf32>
    %7 = arith.maximumf %5, %6 : vector<112x128xf32>
    %8 = math.tanh %7 : vector<112x128xf32>
    %c0_6 = arith.constant 0 : index
    %c0_7 = arith.constant 0 : index
    %9 = vector.load %arg5[%c0_6, %c0_7] : memref<1x128xf32, #tpu.memory_space<vmem>>, vector<1x128xf32>
    %10 = vector.broadcast %9 : vector<1x128xf32> to vector<112x128xf32>
    %11 = arith.mulf %8, %10 : vector<112x128xf32>
    %cst_8 = arith.constant dense<0.000000e+00> : vector<112xf32>
    %12 = vector.multi_reduction <add>, %11, %cst_8 [1] : vector<112x128xf32> to vector<112xf32>
    %13 = vector.shape_cast %12 : vector<112xf32> to vector<112x1xf32>
    %c0_9 = arith.constant 0 : index
    %c0_10 = arith.constant 0 : index
    %14 = memref.load %arg6[%c0_9, %c0_10] : memref<1x1xf32, #tpu.memory_space<smem>>
    %15 = vector.broadcast %14 : f32 to vector<112x1xf32>
    %16 = arith.addf %13, %15 : vector<112x1xf32>
    %cst_11 = arith.constant 0.000000e+00 : f32
    %17 = vector.broadcast %cst_11 : f32 to vector<112x1xf32>
    %18 = arith.maximumf %16, %17 : vector<112x1xf32>
    %19 = vector.shape_cast %18 : vector<112x1xf32> to vector<7x16xf32>
    %cst_12 = arith.constant dense<0xFF800000> : vector<7xf32>
    %20 = vector.multi_reduction <maximumf>, %19, %cst_12 [1] : vector<7x16xf32> to vector<7xf32>
    %21 = vector.shape_cast %20 : vector<7xf32> to vector<7x1xf32>
    %22 = vector.broadcast %21 : vector<7x1xf32> to vector<7x16xf32>
    %23 = arith.subf %19, %22 : vector<7x16xf32>
    %24 = math.exp %23 : vector<7x16xf32>
    %cst_13 = arith.constant dense<0.000000e+00> : vector<7xf32>
    %25 = vector.multi_reduction <add>, %24, %cst_13 [1] : vector<7x16xf32> to vector<7xf32>
    %26 = vector.shape_cast %25 : vector<7xf32> to vector<7x1xf32>
    %27 = vector.broadcast %26 : vector<7x1xf32> to vector<7x16xf32>
    %28 = arith.divf %24, %27 : vector<7x16xf32>
    %29 = vector.shape_cast %28 : vector<7x16xf32> to vector<8x14x1xf32>
    %c0_14 = arith.constant 0 : index
    %c0_15 = arith.constant 0 : index
    %c0_16 = arith.constant 0 : index
    %30 = vector.load %arg2[%c0_14, %c0_15, %c0_16] : memref<8x14x128xf32, #tpu.memory_space<vmem>>, vector<8x14x128xf32>
    %31 = vector.broadcast %29 : vector<8x14x1xf32> to vector<8x14x128xf32>
    %32 = arith.mulf %31, %30 : vector<8x14x128xf32>
    %cst_17 = arith.constant dense<0.000000e+00> : vector<8x128xf32>
    %33 = vector.multi_reduction <add>, %32, %cst_17 [1] : vector<8x14x128xf32> to vector<8x128xf32>
    %c0_18 = arith.constant 0 : index
    %c0_19 = arith.constant 0 : index
    %34 = vector.load %arg7[%c0_18, %c0_19] : memref<8x128xf32, #tpu.memory_space<vmem>>, vector<8x128xf32>
    tpu.vector_store %arg7[%c0_18, %c0_19], %33 {strides = array<i32>} : memref<8x128xf32, #tpu.memory_space<vmem>>, vector<8x128xf32>,
    return
  }
  func.func @transform_0(%arg0: i32) -> (i32, i32) {
    %c0_i32 = arith.constant 0 : i32
    %c0_i32_0 = arith.constant 0 : i32
    return %arg0, %c0_i32 : i32, i32
  }
  func.func @transform_1(%arg0: i32) -> (i32, i32, i32) {
    %c0_i32 = arith.constant 0 : i32
    %c0_i32_0 = arith.constant 0 : i32
    %c0_i32_1 = arith.constant 0 : i32
    return %arg0, %c0_i32, %c0_i32_0 : i32, i32, i32
  }
  func.func @transform_2(%arg0: i32) -> (i32, i32) {
    %c0_i32 = arith.constant 0 : i32
    %c0_i32_0 = arith.constant 0 : i32
    %c0_i32_1 = arith.constant 0 : i32
    return %c0_i32, %c0_i32_0 : i32, i32
  }
  func.func @transform_3(%arg0: i32) -> (i32, i32) {
    %c0_i32 = arith.constant 0 : i32
    %c0_i32_0 = arith.constant 0 : i32
    %c0_i32_1 = arith.constant 0 : i32
    return %c0_i32, %c0_i32_0 : i32, i32
  }
  func.func @transform_4(%arg0: i32) -> (i32, i32) {
    %c0_i32 = arith.constant 0 : i32
    %c0_i32_0 = arith.constant 0 : i32
    %c0_i32_1 = arith.constant 0 : i32
    return %c0_i32, %c0_i32_0 : i32, i32
  }
  func.func @transform_5(%arg0: i32) -> (i32, i32) {
    %c0_i32 = arith.constant 0 : i32
    %c0_i32_0 = arith.constant 0 : i32
    %c0_i32_1 = arith.constant 0 : i32
    return %c0_i32, %c0_i32_0 : i32, i32
  }
  func.func @transform_6(%arg0: i32) -> (i32, i32) {
    %c0_i32 = arith.constant 0 : i32
    %c0_i32_0 = arith.constant 0 : i32
    return %arg0, %c0_i32 : i32, i32
  }
}

</mosaic_0001>

<llo_original>
// kernel: tpu_custom_call.1
$region0: #{tpu_custom_call.1}
  #allocation0 [shape = 'u32[]', space=smem, size = 0x4, offset = 0x4, fixed_abs, tag = 'smem constant byte address 0x4 - core index']
  #allocation1 [shape = 'u32[144,128]{1,0:T(1,128)}', space=vmem, size = 0x12000, scoped, tag = 'internal scratch']
  #allocation2 [shape = 'f32[1,1]{1,0:T(1,128)S(6)}', space=smem, size = 0x200, scoped, tag = 'scoped memory for tpu_custom_call.1']
  %s0 = inlined_call_operand.vmem [shape: bf16[224,128], index: 0, kind: input, shape index: {}]
  %s1 = inlined_call_operand.vmem [shape: f32[16,14,128], index: 1, kind: input, shape index: {}]
  %s2 = inlined_call_operand.vmem [shape: bf16[128,128], index: 2, kind: input, shape index: {}]
  %s3 = inlined_call_operand.vmem [shape: f32[1,128], index: 3, kind: input, shape index: {}]
  %s4 = inlined_call_operand.vmem [shape: f32[1,128], index: 4, kind: input, shape index: {}]
  %s5 = inlined_call_operand.<no memory space> [shape: f32[1,1], index: 5, kind: input, shape index: {}]
  %s6 = inlined_call_operand.hbm [shape: f32[16,128], index: 6, kind: output, shape index: {}]
  %s7 = sld [smem:[#allocation0]]
  $region57: #{tpu_custom_call.1} parent=0
    _
  %s9 = ssub.s32 1, %s7
  %s10 = scalar_select 0, %s9, %s7
  %11 = sst [smem:[#allocation2]] %s5
  $region1: #{tpu_custom_call.1} parent=0
    #allocation3 [shape = 'u8[8192]{0}', space=vmem, size = 0x2000, scoped, tag = 'output window, operand 0']
    #allocation4 [shape = 's32[2]{0}', space=sflag, size = 0x8, scoped, tag = 'scoped memory for tpu_custom_call.1']
    %12 = vsyncpa [#allocation4], 0
    %s13 = scalar_lea.sflag [#allocation4], 1
    %14 = vsyncpa %s13, 0
    loop: start=0, step=1, limit=4
    $region2: #{tpu_custom_call.1} parent=1 // loop_pre_header
      _
    $region3: #{tpu_custom_call.1} parent=1 // loop_header
      %s16 = sphi 0, %s20
      %p17 = scmp.ge.s32.totalorder %s16, 4
      %s26 = sphi 0, %s28
      %s29 = sphi 0, %s26
      %s30 = sphi 0, %s29
      %s46 = sphi 0, %s30
      %s52 = sphi 0, %s54
      %s55 = sphi 0, %s52
      %s56 = sphi 0, %s55
      %s72 = sphi 0, %s56
      %s76 = sphi 0, %s76
      %s78 = sphi 0, %s76
      %s79 = sphi 0, %s78
      %s93 = sphi 0, %s79
      %s97 = sphi 0, %s97
      %s99 = sphi 0, %s97
      %s100 = sphi 0, %s99
      %s114 = sphi 0, %s100
      %s118 = sphi 0, %s118
      %s120 = sphi 0, %s118
      %s121 = sphi 0, %s120
      %s135 = sphi 0, %s121
      %s139 = sphi 0, %s139
      %s141 = sphi 0, %s139
      %s142 = sphi 0, %s141
      %s156 = sphi 0, %s142
      %s162 = sphi 0, %s164
      %s165 = sphi 0, %s162
      %s166 = sphi 0, %s165
      %s182 = sphi 0, %s166
    $region4: #{tpu_custom_call.1} parent=1 // loop_header_branch
      %19 = sbr.rel (%p17) target = $region8
    $region5: #{tpu_custom_call.1} parent=1 // loop_body
      %s21 = ssub.s32 %s16, 1
      %s22 = ssub.s32 %s16, 2
      %s23 = sadd.s32 %s16, 1
      %s24 = ssub.s32 %s16, %s23
      %p25 = scmp.eq.s32.totalorder %s24, 0
      %s27 = sadd.s32 %s26, 1
      %s28 = scalar_select %p25, %s26, %s27
      %p31 = pneg %p25
      %p32 = scmp.eq.s32.totalorder %s16, 1
      %p33 = por %p31, %p32
      %p34 = scmp.ne.s32.totalorder %s26, %s29
      %p35 = scmp.eq.s32.totalorder %s16, 0
      %p36 = por %p34, %p35
      %p37 = scmp.ne.s32.totalorder %s26, %s29
      %p38 = scmp.eq.s32.totalorder %s21, 1
      %p39 = por %p37, %p38
      %p40 = scmp.ne.s32.totalorder %s29, %s30
      %p41 = scmp.eq.s32.totalorder %s21, 0
      %p42 = por %p40, %p41
      %p43 = scmp.ne.s32.totalorder %s29, %s30
      %p44 = scmp.eq.s32.totalorder %s22, 1
      %p45 = por %p43, %p44
      %p47 = scmp.ne.s32.totalorder %s30, %s46
      %p48 = scmp.eq.s32.totalorder %s22, 0
      %p49 = por %p47, %p48
      %s50 = ssub.s32 %s16, %s23
      %p51 = scmp.eq.s32.totalorder %s50, 0
      %s53 = sadd.s32 %s52, 1
      %s54 = scalar_select %p51, %s52, %s53
      %p57 = pneg %p51
      %p58 = scmp.eq.s32.totalorder %s16, 1
      %p59 = por %p57, %p58
      %p60 = scmp.ne.s32.totalorder %s52, %s55
      %p61 = scmp.eq.s32.totalorder %s16, 0
      %p62 = por %p60, %p61
      %p63 = scmp.ne.s32.totalorder %s52, %s55
      %p64 = scmp.eq.s32.totalorder %s21, 1
      %p65 = por %p63, %p64
      %p66 = scmp.ne.s32.totalorder %s55, %s56
      %p67 = scmp.eq.s32.totalorder %s21, 0
      %p68 = por %p66, %p67
      %p69 = scmp.ne.s32.totalorder %s55, %s56
      %p70 = scmp.eq.s32.totalorder %s22, 1
      %p71 = por %p69, %p70
      %p73 = scmp.ne.s32.totalorder %s56, %s72
      %p74 = scmp.eq.s32.totalorder %s22, 0
      %p75 = por %p73, %p74
      %s77 = sadd.s32 %s76, 1
      %p80 = scmp.eq.s32.totalorder %s16, 1
      %p81 = scmp.ne.s32.totalorder %s76, %s78
      %p82 = scmp.eq.s32.totalorder %s16, 0
      %p83 = por %p81, %p82
      %p84 = scmp.ne.s32.totalorder %s76, %s78
      %p85 = scmp.eq.s32.totalorder %s21, 1
      %p86 = por %p84, %p85
      %p87 = scmp.ne.s32.totalorder %s78, %s79
      %p88 = scmp.eq.s32.totalorder %s21, 0
      %p89 = por %p87, %p88
      %p90 = scmp.ne.s32.totalorder %s78, %s79
      %p91 = scmp.eq.s32.totalorder %s22, 1
      %p92 = por %p90, %p91
      %p94 = scmp.ne.s32.totalorder %s79, %s93
      %p95 = scmp.eq.s32.totalorder %s22, 0
      %p96 = por %p94, %p95
      %s98 = sadd.s32 %s97, 1
      %p101 = scmp.eq.s32.totalorder %s16, 1
      %p102 = scmp.ne.s32.totalorder %s97, %s99
      %p103 = scmp.eq.s32.totalorder %s16, 0
      %p104 = por %p102, %p103
      %p105 = scmp.ne.s32.totalorder %s97, %s99
      %p106 = scmp.eq.s32.totalorder %s21, 1
      %p107 = por %p105, %p106
      %p108 = scmp.ne.s32.totalorder %s99, %s100
      %p109 = scmp.eq.s32.totalorder %s21, 0
      %p110 = por %p108, %p109
      %p111 = scmp.ne.s32.totalorder %s99, %s100
      %p112 = scmp.eq.s32.totalorder %s22, 1
      %p113 = por %p111, %p112
      %p115 = scmp.ne.s32.totalorder %s100, %s114
      %p116 = scmp.eq.s32.totalorder %s22, 0
      %p117 = por %p115, %p116
      %s119 = sadd.s32 %s118, 1
      %p122 = scmp.eq.s32.totalorder %s16, 1
      %p123 = scmp.ne.s32.totalorder %s118, %s120
      %p124 = scmp.eq.s32.totalorder %s16, 0
      %p125 = por %p123, %p124
      %p126 = scmp.ne.s32.totalorder %s118, %s120
      %p127 = scmp.eq.s32.totalorder %s21, 1
      %p128 = por %p126, %p127
      %p129 = scmp.ne.s32.totalorder %s120, %s121
      %p130 = scmp.eq.s32.totalorder %s21, 0
      %p131 = por %p129, %p130
      %p132 = scmp.ne.s32.totalorder %s120, %s121
      %p133 = scmp.eq.s32.totalorder %s22, 1
      %p134 = por %p132, %p133
      %p136 = scmp.ne.s32.totalorder %s121, %s135
      %p137 = scmp.eq.s32.totalorder %s22, 0
      %p138 = por %p136, %p137
      %s140 = sadd.s32 %s139, 1
      %p143 = scmp.eq.s32.totalorder %s16, 1
      %p144 = scmp.ne.s32.totalorder %s139, %s141
      %p145 = scmp.eq.s32.totalorder %s16, 0
      %p146 = por %p144, %p145
      %p147 = scmp.ne.s32.totalorder %s139, %s141
      %p148 = scmp.eq.s32.totalorder %s21, 1
      %p149 = por %p147, %p148
      %p150 = scmp.ne.s32.totalorder %s141, %s142
      %p151 = scmp.eq.s32.totalorder %s21, 0
      %p152 = por %p150, %p151
      %p153 = scmp.ne.s32.totalorder %s141, %s142
      %p154 = scmp.eq.s32.totalorder %s22, 1
      %p155 = por %p153, %p154
      %p157 = scmp.ne.s32.totalorder %s142, %s156
      %p158 = scmp.eq.s32.totalorder %s22, 0
      %p159 = por %p157, %p158
      %s160 = ssub.s32 %s16, %s23
      %p161 = scmp.eq.s32.totalorder %s160, 0
      %s163 = sadd.s32 %s162, 1
      %s164 = scalar_select %p161, %s162, %s163
      %p167 = pneg %p161
      %p168 = scmp.eq.s32.totalorder %s16, 1
      %p169 = por %p167, %p168
      %p170 = scmp.ne.s32.totalorder %s162, %s165
      %p171 = scmp.eq.s32.totalorder %s16, 0
      %p172 = por %p170, %p171
      %p173 = scmp.ne.s32.totalorder %s162, %s165
      %p174 = scmp.eq.s32.totalorder %s21, 1
      %p175 = por %p173, %p174
      %p176 = scmp.ne.s32.totalorder %s165, %s166
      %p177 = scmp.eq.s32.totalorder %s21, 0
      %p178 = por %p176, %p177
      %p179 = scmp.ne.s32.totalorder %s165, %s166
      %p180 = scmp.eq.s32.totalorder %s22, 1
      %p181 = por %p179, %p180
      %p183 = scmp.ne.s32.totalorder %s166, %s182
      %p184 = scmp.eq.s32.totalorder %s22, 0
      %p185 = por %p183, %p184
      %p186 = scmp.le.s32.totalorder 1, %s16
      %p187 = scmp.lt.s32.totalorder %s16, 3
      %p188 = pnand %p186, %p187
      %p189 = pneg %p188
      // Predicated region
      $region9: #{tpu_custom_call.1} parent=5 // pred_check
        _
      $region10: #{tpu_custom_call.1} parent=5 // pred_check_branch
        %191 = sbr.rel (%p188) target = $region12
      $region11: #{tpu_custom_call.1} parent=5 // pred_region
        %s192 = ssub.s32 %s16, 1
        // Predicated region
        $region13: #{tpu_custom_call.1} parent=11 // pred_check
          %p193 = pneg %p89
        $region14: #{tpu_custom_call.1} parent=11 // pred_check_branch
          %195 = sbr.rel (%p193) target = $region16
        $region15: #{tpu_custom_call.1} parent=11 // pred_region
          _
        $region16: #{tpu_custom_call.1} parent=11 // pred_fallthru
          _
        // Predicated region
        $region17: #{tpu_custom_call.1} parent=11 // pred_check
          %p196 = pneg %p110
        $region18: #{tpu_custom_call.1} parent=11 // pred_check_branch
          %198 = sbr.rel (%p196) target = $region20
        $region19: #{tpu_custom_call.1} parent=11 // pred_region
          _
        $region20: #{tpu_custom_call.1} parent=11 // pred_fallthru
          _
        // Predicated region
        $region21: #{tpu_custom_call.1} parent=11 // pred_check
          %p199 = pneg %p131
        $region22: #{tpu_custom_call.1} parent=11 // pred_check_branch
          %201 = sbr.rel (%p199) target = $region24
        $region23: #{tpu_custom_call.1} parent=11 // pred_region
          _
        $region24: #{tpu_custom_call.1} parent=11 // pred_fallthru
          _
        // Predicated region
        $region25: #{tpu_custom_call.1} parent=11 // pred_check
          %p202 = pneg %p152
        $region26: #{tpu_custom_call.1} parent=11 // pred_check_branch
          %204 = sbr.rel (%p202) target = $region28
        $region27: #{tpu_custom_call.1} parent=11 // pred_region
          _
        $region28: #{tpu_custom_call.1} parent=11 // pred_fallthru
          _
      $region12: #{tpu_custom_call.1} parent=5 // pred_fallthru
        _
      %p205 = scmp.lt.s32.totalorder %s16, 2
      // Predicated region
      $region29: #{tpu_custom_call.1} parent=5 // pred_check
        %p206 = pneg %p205
      $region30: #{tpu_custom_call.1} parent=5 // pred_check_branch
        %208 = sbr.rel (%p206) target = $region32
      $region31: #{tpu_custom_call.1} parent=5 // pred_region
        // Predicated region
        $region33: #{tpu_custom_call.1} parent=31 // pred_check
          %p209 = pneg %p36
        $region34: #{tpu_custom_call.1} parent=31 // pred_check_branch
          %211 = sbr.rel (%p209) target = $region36
        $region35: #{tpu_custom_call.1} parent=31 // pred_region
          %s212 = smul.u32 14, %s16
          %p213 = scmp.lt.s32.totalorder %s212, 27
          %s214 = scalar_select %p213, %s212, 27
          %s215 = smul.addr %s214, 4
          %s216 = scalar_lea.vmem %s0, %s215
          %s217 = smul.u32 14, %s16
        $region36: #{tpu_custom_call.1} parent=31 // pred_fallthru
          _
        // Predicated region
        $region37: #{tpu_custom_call.1} parent=31 // pred_check
          %p218 = pneg %p62
        $region38: #{tpu_custom_call.1} parent=31 // pred_check_branch
          %220 = sbr.rel (%p218) target = $region40
        $region39: #{tpu_custom_call.1} parent=31 // pred_region
          %s221 = smul.u32 8, %s16
          %p222 = scmp.lt.s32.totalorder %s221, 15
          %s223 = scalar_select %p222, %s221, 15
          %s224 = smul.addr %s223, 2
          %s225 = smul.addr %s224, 8
          %s226 = scalar_lea.vmem %s1, %s225
          %s227 = smul.u32 8, %s16
        $region40: #{tpu_custom_call.1} parent=31 // pred_fallthru
          _
      $region32: #{tpu_custom_call.1} parent=5 // pred_fallthru
        _
      %p228 = scmp.le.s32.totalorder 1, %s16
      %p229 = scmp.lt.s32.totalorder %s16, 3
      %p230 = pnand %p228, %p229
      %p231 = pneg %p230
      // Predicated region
      $region41: #{tpu_custom_call.1} parent=5 // pred_check
        _
      $region42: #{tpu_custom_call.1} parent=5 // pred_check_branch
        %233 = sbr.rel (%p230) target = $region44
      $region43: #{tpu_custom_call.1} parent=5 // pred_region
        %s234 = ssub.s32 %s16, 1
        %s235 = smul.u32 14, %s21
        %p236 = scmp.lt.s32.totalorder %s235, 27
        %s237 = scalar_select %p236, %s235, 27
        %s238 = smul.addr %s237, 4
        %s239 = scalar_lea.vmem %s0, %s238
        %p240 = pneg %p42
        %p241 = pneg %p39
        %s242 = smul.u32 8, %s21
        %p243 = scmp.lt.s32.totalorder %s242, 15
        %s244 = scalar_select %p243, %s242, 15
        %s245 = smul.addr %s244, 2
        %s246 = smul.addr %s245, 8
        %s247 = scalar_lea.vmem %s1, %s246
        %p248 = pneg %p68
        %p249 = pneg %p65
        %p250 = pneg %p89
        %p251 = pneg %p86
        %p252 = pneg %p110
        %p253 = pneg %p107
        %p254 = pneg %p131
        %p255 = pneg %p128
        %p256 = pneg %p152
        %p257 = pneg %p149
        %p258 = pneg %p178
        %p259 = pneg %p175
        %s260 = sand.u32 %s165, 1
        %s261 = scalar_lea.sflag [#allocation4], %s260
        %s262 = sand.u32 %s165, 1
        %s263 = smul.addr %s262, 8
        %s264 = scalar_lea.vmem [#allocation3], %s263
        %s265 = smul.u32 14, %s21
        %p266 = scmp.lt.s32.totalorder %s265, 27
        %s267 = scalar_select %p266, %s265, 27
        %s268 = smul.addr %s267, 4
        %s269 = scalar_lea.vmem %s0, %s268
        %s270 = smul.u32 14, %s21
        %s271 = smul.u32 8, %s21
        %p272 = scmp.lt.s32.totalorder %s271, 15
        %s273 = scalar_select %p272, %s271, 15
        %s274 = smul.addr %s273, 2
        %s275 = smul.addr %s274, 8
        %s276 = scalar_lea.vmem %s1, %s275
        %s277 = smul.u32 8, %s21
        %v279 = vld [vmem:[%s269] sm:$0xf]
        %v280 = vld [vmem:[%s269 + $0x4] sm:$0xf]
        %v281 = vld [vmem:[%s269 + $0x8] sm:$0xf]
        %v282 = vld [vmem:[%s269 + $0xc] sm:$0xf]
        %v283 = vld [vmem:[%s269 + $0x10] sm:$0xf]
        %v284 = vld [vmem:[%s269 + $0x14] sm:$0xf]
        %v285 = vld [vmem:[%s269 + $0x18] sm:$0xf]
        %v286 = vld [vmem:[%s269 + $0x1c] sm:$0xf]
        %v287 = vld [vmem:[%s269 + $0x20] sm:$0xf]
        %v288 = vld [vmem:[%s269 + $0x24] sm:$0xf]
        %v289 = vld [vmem:[%s269 + $0x28] sm:$0xf]
        %v290 = vld [vmem:[%s269 + $0x2c] sm:$0xf]
        %v291 = vld [vmem:[%s269 + $0x30] sm:$0xf]
        %v292 = vld [vmem:[%s269 + $0x34] sm:$0xf]
        %v293 = vld [vmem:[%s2] sm:$0xf]
        %v294 = vld [vmem:[%s2 + $0x4] sm:$0xf]
        %v295 = vld [vmem:[%s2 + $0x8] sm:$0xf]
        %v296 = vld [vmem:[%s2 + $0xc] sm:$0xf]
        %v297 = vld [vmem:[%s2 + $0x10] sm:$0xf]
        %v298 = vld [vmem:[%s2 + $0x14] sm:$0xf]
        %v299 = vld [vmem:[%s2 + $0x18] sm:$0xf]
        %v300 = vld [vmem:[%s2 + $0x1c] sm:$0xf]
        %v301 = vld [vmem:[%s2 + $0x20] sm:$0xf]
        %v302 = vld [vmem:[%s2 + $0x24] sm:$0xf]
        %v303 = vld [vmem:[%s2 + $0x28] sm:$0xf]
        %v304 = vld [vmem:[%s2 + $0x2c] sm:$0xf]
        %v305 = vld [vmem:[%s2 + $0x30] sm:$0xf]
        %v306 = vld [vmem:[%s2 + $0x34] sm:$0xf]
        %v307 = vld [vmem:[%s2 + $0x38] sm:$0xf]
        %v308 = vld [vmem:[%s2 + $0x3c] sm:$0xf]
        %v309 = vld [vmem:[%s3] sm:$0x1]
        %v311 = vlaneseq
        %v312 = vshrl.u32 %v311, 7
        %v313 = vsub.s32 0, %v312
        %v314 = vrot.slane %v309, %v313
        %v330 = vunpack.c.l.b16 %v279
        %v331 = vunpack.c.l.b16 %v280
        %v332 = vunpack.c.l.b16 %v281
        %v333 = vunpack.c.l.b16 %v282
        %v334 = vunpack.c.l.b16 %v283
        %v335 = vunpack.c.l.b16 %v284
        %v336 = vunpack.c.l.b16 %v285
        %v337 = vunpack.c.l.b16 %v286
        %v338 = vunpack.c.l.b16 %v287
        %v339 = vunpack.c.l.b16 %v288
        %v340 = vunpack.c.l.b16 %v289
        %v341 = vunpack.c.l.b16 %v290
        %v342 = vunpack.c.l.b16 %v291
        %v343 = vunpack.c.l.b16 %v292
        %v344 = vpack.c.b16 %v331, %v330
        %v345 = vpack.c.b16 %v333, %v332
        %v346 = vpack.c.b16 %v335, %v334
        %v347 = vpack.c.b16 %v337, %v336
        %v348 = vpack.c.b16 %v339, %v338
        %v349 = vpack.c.b16 %v341, %v340
        %v350 = vpack.c.b16 %v343, %v342
        %v374 = vunpack.c.l.b16 %v293
        %v375 = vunpack.c.l.b16 %v294
        %v376 = vunpack.c.l.b16 %v295
        %v377 = vunpack.c.l.b16 %v296
        %v378 = vunpack.c.l.b16 %v297
        %v379 = vunpack.c.l.b16 %v298
        %v380 = vunpack.c.l.b16 %v299
        %v381 = vunpack.c.l.b16 %v300
        %v382 = vunpack.c.l.b16 %v301
        %v383 = vunpack.c.l.b16 %v302
        %v384 = vunpack.c.l.b16 %v303
        %v385 = vunpack.c.l.b16 %v304
        %v386 = vunpack.c.l.b16 %v305
        %v387 = vunpack.c.l.b16 %v306
        %v388 = vunpack.c.l.b16 %v307
        %v389 = vunpack.c.l.b16 %v308
        %v390 = vpack.c.b16 %v375, %v374
        %v391 = vpack.c.b16 %v377, %v376
        %v392 = vpack.c.b16 %v379, %v378
        %v393 = vpack.c.b16 %v381, %v380
        %v394 = vpack.c.b16 %v383, %v382
        %v395 = vpack.c.b16 %v385, %v384
        %v396 = vpack.c.b16 %v387, %v386
        %v397 = vpack.c.b16 %v389, %v388
        %406 = vmatprep.subr.bf16.mxu0 0
        %407 = vmatpush1.bf16.msra.mxu0 %v397
        %408 = vmatprep.subr.bf16.mxu0 0
        %409 = vmatpush1.bf16.msra.mxu0 %v396
        %410 = vmatprep.subr.bf16.mxu0 0
        %411 = vmatpush1.bf16.msra.mxu0 %v395
        %412 = vmatprep.subr.bf16.mxu0 0
        %413 = vmatpush1.bf16.msra.mxu0 %v394
        %414 = vmatprep.subr.bf16.mxu0 0
        %415 = vmatpush1.bf16.msra.mxu0 %v393
        %416 = vmatprep.subr.bf16.mxu0 0
        %417 = vmatpush1.bf16.msra.mxu0 %v392
        %418 = vmatprep.subr.bf16.mxu0 0
        %419 = vmatpush1.bf16.msra.mxu0 %v391
        %420 = vmatprep.subr.bf16.mxu0 0
        %421 = vmatpush1.bf16.msra.mxu0 %v390
        %422 = vmatprep.subr.bf16.mxu0 0
        %423 = vmatpush2.bf16.msra.mxu0 0
        %424 = vmatprep.subr.bf16.mxu0 0
        %425 = vmatpush2.bf16.msra.mxu0 0
        %426 = vmatprep.subr.bf16.mxu0 0
        %427 = vmatpush2.bf16.msra.mxu0 0
        %428 = vmatprep.subr.bf16.mxu0 0
        %429 = vmatpush2.bf16.msra.mxu0 0
        %430 = vmatprep.subr.bf16.mxu0 0
        %431 = vmatpush2.bf16.msra.mxu0 0
        %432 = vmatprep.subr.bf16.mxu0 0
        %433 = vmatpush2.bf16.msra.mxu0 0
        %434 = vmatprep.subr.bf16.mxu0 0
        %435 = vmatpush2.bf16.msra.mxu0 0
        %436 = vmatprep.subr.bf16.mxu0 0
        %437 = vmatpush2.bf16.msra.mxu0 0
        %438 = vmatprep.mubr.bf16.mxu0 0
        %439 = vmatmul.mubr.bf16.gmra.mxu0 %v344
        %v440 = vpop.f32.mrf.mxu0
        %v441 = vadd.f32 %v314, %v440
        %v442 = vpop.f32.mrf.mxu0
        %v443 = vpop.f32.mrf.mxu0
        %v444 = vadd.f32 %v314, %v443
        %v445 = vpop.f32.mrf.mxu0
        %446 = vmatprep.mubr.bf16.mxu0 0
        %447 = vmatmul.mubr.bf16.gmra.mxu0 %v345
        %v448 = vpop.f32.mrf.mxu0
        %v449 = vadd.f32 %v314, %v448
        %v450 = vpop.f32.mrf.mxu0
        %v451 = vpop.f32.mrf.mxu0
        %v452 = vadd.f32 %v314, %v451
        %v453 = vpop.f32.mrf.mxu0
        %454 = vmatprep.mubr.bf16.mxu0 0
        %455 = vmatmul.mubr.bf16.gmra.mxu0 %v346
        %v456 = vpop.f32.mrf.mxu0
        %v457 = vadd.f32 %v314, %v456
        %v458 = vpop.f32.mrf.mxu0
        %v459 = vpop.f32.mrf.mxu0
        %v460 = vadd.f32 %v314, %v459
        %v461 = vpop.f32.mrf.mxu0
        %462 = vmatprep.mubr.bf16.mxu0 0
        %463 = vmatmul.mubr.bf16.gmra.mxu0 %v347
        %v464 = vpop.f32.mrf.mxu0
        %v465 = vadd.f32 %v314, %v464
        %v466 = vpop.f32.mrf.mxu0
        %v467 = vpop.f32.mrf.mxu0
        %v468 = vadd.f32 %v314, %v467
        %v469 = vpop.f32.mrf.mxu0
        %470 = vmatprep.mubr.bf16.mxu0 0
        %471 = vmatmul.mubr.bf16.gmra.mxu0 %v348
        %v472 = vpop.f32.mrf.mxu0
        %v473 = vadd.f32 %v314, %v472
        %v474 = vpop.f32.mrf.mxu0
        %v475 = vpop.f32.mrf.mxu0
        %v476 = vadd.f32 %v314, %v475
        %v477 = vpop.f32.mrf.mxu0
        %478 = vmatprep.mubr.bf16.mxu0 0
        %479 = vmatmul.mubr.bf16.gmra.mxu0 %v349
        %v480 = vpop.f32.mrf.mxu0
        %v481 = vadd.f32 %v314, %v480
        %v482 = vpop.f32.mrf.mxu0
        %v483 = vpop.f32.mrf.mxu0
        %v484 = vadd.f32 %v314, %v483
        %v485 = vpop.f32.mrf.mxu0
        %486 = vmatprep.mubr.bf16.mxu0 0
        %487 = vmatmul.mubr.bf16.gmra.mxu0 %v350
        %v488 = vpop.f32.mrf.mxu0
        %v489 = vadd.f32 %v314, %v488
        %v490 = vpop.f32.mrf.mxu0
        %v491 = vpop.f32.mrf.mxu0
        %v492 = vadd.f32 %v314, %v491
        %v493 = vpop.f32.mrf.mxu0
        %494 = vdwg.mxu0
        %v495 = vmax.f32 %v441, 0.0
        %v496 = vmax.f32 %v444, 0.0
        %v497 = vmax.f32 %v449, 0.0
        %v498 = vmax.f32 %v452, 0.0
        %v499 = vmax.f32 %v457, 0.0
        %v500 = vmax.f32 %v460, 0.0
        %v501 = vmax.f32 %v465, 0.0
        %v502 = vmax.f32 %v468, 0.0
        %v503 = vmax.f32 %v473, 0.0
        %v504 = vmax.f32 %v476, 0.0
        %v505 = vmax.f32 %v481, 0.0
        %v506 = vmax.f32 %v484, 0.0
        %v507 = vmax.f32 %v489, 0.0
        %v508 = vmax.f32 %v492, 0.0
        %v509 = vtanh.pop %v495
        %v510 = vtanh.pop %v496
        %v511 = vtanh.pop %v497
        %v512 = vtanh.pop %v498
        %v513 = vtanh.pop %v499
        %v514 = vtanh.pop %v500
        %v515 = vtanh.pop %v501
        %v516 = vtanh.pop %v502
        %v517 = vtanh.pop %v503
        %v518 = vtanh.pop %v504
        %v519 = vtanh.pop %v505
        %v520 = vtanh.pop %v506
        %v521 = vtanh.pop %v507
        %v522 = vtanh.pop %v508
        %v523 = vld [vmem:[%s4] sm:$0x1]
        %v525 = vlaneseq
        %v526 = vshrl.u32 %v525, 7
        %v527 = vsub.s32 0, %v526
        %v528 = vrot.slane %v523, %v527
        %v530 = vmul.f32 %v509, %v528
        %v531 = vmul.f32 %v510, %v528
        %v532 = vmul.f32 %v511, %v528
        %v533 = vmul.f32 %v512, %v528
        %v534 = vmul.f32 %v513, %v528
        %v535 = vmul.f32 %v514, %v528
        %v536 = vmul.f32 %v515, %v528
        %v537 = vmul.f32 %v516, %v528
        %v538 = vmul.f32 %v517, %v528
        %v539 = vmul.f32 %v518, %v528
        %v540 = vmul.f32 %v519, %v528
        %v541 = vmul.f32 %v520, %v528
        %v542 = vmul.f32 %v521, %v528
        %v543 = vmul.f32 %v522, %v528
        %544 = vadd.xlane.f32.xlu0 %v530
        %v545 = vpop.xlane.xlu0 %544
        %546 = vadd.xlane.f32.xlu0 %v531
        %v547 = vpop.xlane.xlu0 %546
        %548 = vadd.xlane.f32.xlu0 %v532
        %v549 = vpop.xlane.xlu0 %548
        %550 = vadd.xlane.f32.xlu0 %v533
        %v551 = vpop.xlane.xlu0 %550
        %552 = vadd.xlane.f32.xlu0 %v534
        %v553 = vpop.xlane.xlu0 %552
        %554 = vadd.xlane.f32.xlu0 %v535
        %v555 = vpop.xlane.xlu0 %554
        %556 = vadd.xlane.f32.xlu0 %v536
        %v557 = vpop.xlane.xlu0 %556
        %558 = vadd.xlane.f32.xlu0 %v537
        %v559 = vpop.xlane.xlu0 %558
        %560 = vadd.xlane.f32.xlu0 %v538
        %v561 = vpop.xlane.xlu0 %560
        %562 = vadd.xlane.f32.xlu0 %v539
        %v563 = vpop.xlane.xlu0 %562
        %564 = vadd.xlane.f32.xlu0 %v540
        %v565 = vpop.xlane.xlu0 %564
        %566 = vadd.xlane.f32.xlu0 %v541
        %v567 = vpop.xlane.xlu0 %566
        %568 = vadd.xlane.f32.xlu0 %v542
        %v569 = vpop.xlane.xlu0 %568
        %570 = vadd.xlane.f32.xlu0 %v543
        %v571 = vpop.xlane.xlu0 %570
        %s572 = sld [smem:[#allocation2]]
        %v573 = vstv %s572
        %v574 = vadd.f32 %v545, %v573
        %v575 = vadd.f32 %v547, %v573
        %v576 = vadd.f32 %v549, %v573
        %v577 = vadd.f32 %v551, %v573
        %v578 = vadd.f32 %v553, %v573
        %v579 = vadd.f32 %v555, %v573
        %v580 = vadd.f32 %v557, %v573
        %v581 = vadd.f32 %v559, %v573
        %v582 = vadd.f32 %v561, %v573
        %v583 = vadd.f32 %v563, %v573
        %v584 = vadd.f32 %v565, %v573
        %v585 = vadd.f32 %v567, %v573
        %v586 = vadd.f32 %v569, %v573
        %v587 = vadd.f32 %v571, %v573
        %v588 = vmax.f32 %v574, 0.0
        %v589 = vmax.f32 %v575, 0.0
        %v590 = vmax.f32 %v576, 0.0
        %v591 = vmax.f32 %v577, 0.0
        %v592 = vmax.f32 %v578, 0.0
        %v593 = vmax.f32 %v579, 0.0
        %v594 = vmax.f32 %v580, 0.0
        %v595 = vmax.f32 %v581, 0.0
        %v596 = vmax.f32 %v582, 0.0
        %v597 = vmax.f32 %v583, 0.0
        %v598 = vmax.f32 %v584, 0.0
        %v599 = vmax.f32 %v585, 0.0
        %v600 = vmax.f32 %v586, 0.0
        %v601 = vmax.f32 %v587, 0.0
        %v616 = vlaneseq
        %v617 = vand.u32 %v616, 127
        %v618 = vlaneseq
        %v619 = vshrl.u32 %v618, 7
        %v620 = vsub.s32 %v617, %v619
        %v621 = vrot.slane %v588, %v620
        %v622 = vadd.s32 %v617, 4294967288
        %v623 = vlaneseq
        %v624 = vshrl.u32 %v623, 7
        %v625 = vsub.s32 %v622, %v624
        %v626 = vrot.slane %v589, %v625
        %vm627 = vcmask 130112
        %v628 = vsel %vm627, %v626, %v621
        %v629 = vlaneseq
        %v630 = vshrl.u32 %v629, 7
        %v631 = vsub.s32 %v617, %v630
        %v632 = vrot.slane %v590, %v631
        %v633 = vlaneseq
        %v634 = vshrl.u32 %v633, 7
        %v635 = vsub.s32 %v622, %v634
        %v636 = vrot.slane %v591, %v635
        %v637 = vsel %vm627, %v636, %v632
        %v638 = vlaneseq
        %v639 = vshrl.u32 %v638, 7
        %v640 = vsub.s32 %v617, %v639
        %v641 = vrot.slane %v592, %v640
        %v642 = vlaneseq
        %v643 = vshrl.u32 %v642, 7
        %v644 = vsub.s32 %v622, %v643
        %v645 = vrot.slane %v593, %v644
        %v646 = vsel %vm627, %v645, %v641
        %v647 = vlaneseq
        %v648 = vshrl.u32 %v647, 7
        %v649 = vsub.s32 %v617, %v648
        %v650 = vrot.slane %v594, %v649
        %v651 = vlaneseq
        %v652 = vshrl.u32 %v651, 7
        %v653 = vsub.s32 %v622, %v652
        %v654 = vrot.slane %v595, %v653
        %v655 = vsel %vm627, %v654, %v650
        %v656 = vlaneseq
        %v657 = vshrl.u32 %v656, 7
        %v658 = vsub.s32 %v617, %v657
        %v659 = vrot.slane %v596, %v658
        %v660 = vlaneseq
        %v661 = vshrl.u32 %v660, 7
        %v662 = vsub.s32 %v622, %v661
        %v663 = vrot.slane %v597, %v662
        %v664 = vsel %vm627, %v663, %v659
        %v665 = vlaneseq
        %v666 = vshrl.u32 %v665, 7
        %v667 = vsub.s32 %v617, %v666
        %v668 = vrot.slane %v598, %v667
        %v669 = vlaneseq
        %v670 = vshrl.u32 %v669, 7
        %v671 = vsub.s32 %v622, %v670
        %v672 = vrot.slane %v599, %v671
        %v673 = vsel %vm627, %v672, %v668
        %v674 = vlaneseq
        %v675 = vshrl.u32 %v674, 7
        %v676 = vsub.s32 %v617, %v675
        %v677 = vrot.slane %v600, %v676
        %v678 = vlaneseq
        %v679 = vshrl.u32 %v678, 7
        %v680 = vsub.s32 %v622, %v679
        %v681 = vrot.slane %v601, %v680
        %v682 = vsel %vm627, %v681, %v677
        %vm683 = vcmask 1041409
        %v684 = vsel %vm683, %v637, %v628
        %vm685 = vcmask 1042434
        %v686 = vsel %vm685, %v646, %v684
        %vm687 = vcmask 1043459
        %v688 = vsel %vm687, %v655, %v686
        %vm689 = vcmask 1044484
        %v690 = vsel %vm689, %v664, %v688
        %vm691 = vcmask 1045509
        %v692 = vsel %vm691, %v673, %v690
        %vm693 = vcmask 1046534
        %v694 = vsel %vm693, %v682, %v692
        %vm696 = vcmask 129024
        %v697 = vsel %vm696, %v694, -inf
        %698 = vmax.xlane.f32.xlu0 %v697
        %v699 = vpop.xlane.xlu0 %698
        %v701 = vlaneseq
        %v702 = vshrl.u32 %v701, 7
        %v703 = vsub.s32 0, %v702
        %v704 = vrot.slane %v699, %v703
        %v705 = vlaneseq
        %v706 = vshrl.u32 %v705, 7
        %v707 = vsub.s32 1, %v706
        %v708 = vrot.slane %v699, %v707
        %v709 = vlaneseq
        %v710 = vshrl.u32 %v709, 7
        %v711 = vsub.s32 2, %v710
        %v712 = vrot.slane %v699, %v711
        %v713 = vlaneseq
        %v714 = vshrl.u32 %v713, 7
        %v715 = vsub.s32 3, %v714
        %v716 = vrot.slane %v699, %v715
        %v717 = vlaneseq
        %v718 = vshrl.u32 %v717, 7
        %v719 = vsub.s32 4, %v718
        %v720 = vrot.slane %v699, %v719
        %v721 = vlaneseq
        %v722 = vshrl.u32 %v721, 7
        %v723 = vsub.s32 5, %v722
        %v724 = vrot.slane %v699, %v723
        %v725 = vlaneseq
        %v726 = vshrl.u32 %v725, 7
        %v727 = vsub.s32 6, %v726
        %v728 = vrot.slane %v699, %v727
        %v736 = vsub.f32 %v588, %v704
        %v737 = vsub.f32 %v589, %v704
        %v738 = vsub.f32 %v590, %v708
        %v739 = vsub.f32 %v591, %v708
        %v740 = vsub.f32 %v592, %v712
        %v741 = vsub.f32 %v593, %v712
        %v742 = vsub.f32 %v594, %v716
        %v743 = vsub.f32 %v595, %v716
        %v744 = vsub.f32 %v596, %v720
        %v745 = vsub.f32 %v597, %v720
        %v746 = vsub.f32 %v598, %v724
        %v747 = vsub.f32 %v599, %v724
        %v748 = vsub.f32 %v600, %v728
        %v749 = vsub.f32 %v601, %v728
        %v750 = vmul.f32 %v736, 1.442695
        %v751 = vpow.pop %v750
        %v752 = vmul.f32 %v737, 1.442695
        %v753 = vpow.pop %v752
        %v754 = vmul.f32 %v738, 1.442695
        %v755 = vpow.pop %v754
        %v756 = vmul.f32 %v739, 1.442695
        %v757 = vpow.pop %v756
        %v758 = vmul.f32 %v740, 1.442695
        %v759 = vpow.pop %v758
        %v760 = vmul.f32 %v741, 1.442695
        %v761 = vpow.pop %v760
        %v762 = vmul.f32 %v742, 1.442695
        %v763 = vpow.pop %v762
        %v764 = vmul.f32 %v743, 1.442695
        %v765 = vpow.pop %v764
        %v766 = vmul.f32 %v744, 1.442695
        %v767 = vpow.pop %v766
        %v768 = vmul.f32 %v745, 1.442695
        %v769 = vpow.pop %v768
        %v770 = vmul.f32 %v746, 1.442695
        %v771 = vpow.pop %v770
        %v772 = vmul.f32 %v747, 1.442695
        %v773 = vpow.pop %v772
        %v774 = vmul.f32 %v748, 1.442695
        %v775 = vpow.pop %v774
        %v776 = vmul.f32 %v749, 1.442695
        %v777 = vpow.pop %v776
        %792 = vset.pattern.permute.xlu0 0
        %793 = vperm.xlu0 %792, %v751
        %v794 = vpop.permute.xlu0 %793
        %795 = vset.pattern.permute.xlu0 0
        %796 = vperm.xlu0 %795, %v753
        %v797 = vpop.permute.xlu0 %796
        %798 = vset.pattern.permute.xlu0 0
        %799 = vperm.xlu0 %798, %v755
        %v800 = vpop.permute.xlu0 %799
        %801 = vset.pattern.permute.xlu0 0
        %802 = vperm.xlu0 %801, %v757
        %v803 = vpop.permute.xlu0 %802
        %804 = vset.pattern.permute.xlu0 0
        %805 = vperm.xlu0 %804, %v759
        %v806 = vpop.permute.xlu0 %805
        %807 = vset.pattern.permute.xlu0 0
        %808 = vperm.xlu0 %807, %v761
        %v809 = vpop.permute.xlu0 %808
        %810 = vset.pattern.permute.xlu0 0
        %811 = vperm.xlu0 %810, %v763
        %v812 = vpop.permute.xlu0 %811
        %813 = vset.pattern.permute.xlu0 0
        %814 = vperm.xlu0 %813, %v765
        %v815 = vpop.permute.xlu0 %814
        %816 = vset.pattern.permute.xlu0 0
        %817 = vperm.xlu0 %816, %v767
        %v818 = vpop.permute.xlu0 %817
        %819 = vset.pattern.permute.xlu0 0
        %820 = vperm.xlu0 %819, %v769
        %v821 = vpop.permute.xlu0 %820
        %822 = vset.pattern.permute.xlu0 0
        %823 = vperm.xlu0 %822, %v771
        %v824 = vpop.permute.xlu0 %823
        %825 = vset.pattern.permute.xlu0 0
        %826 = vperm.xlu0 %825, %v773
        %v827 = vpop.permute.xlu0 %826
        %828 = vset.pattern.permute.xlu0 0
        %829 = vperm.xlu0 %828, %v775
        %v830 = vpop.permute.xlu0 %829
        %831 = vset.pattern.permute.xlu0 0
        %832 = vperm.xlu0 %831, %v777
        %v833 = vpop.permute.xlu0 %832
        %v834 = vlaneseq
        %v835 = vshrl.u32 %v834, 7
        %v836 = vsub.s32 %v617, %v835
        %v837 = vrot.slane %v794, %v836
        %v838 = vlaneseq
        %v839 = vshrl.u32 %v838, 7
        %v840 = vsub.s32 %v622, %v839
        %v841 = vrot.slane %v797, %v840
        %v842 = vsel %vm627, %v841, %v837
        %v843 = vlaneseq
        %v844 = vshrl.u32 %v843, 7
        %v845 = vsub.s32 %v617, %v844
        %v846 = vrot.slane %v800, %v845
        %v847 = vlaneseq
        %v848 = vshrl.u32 %v847, 7
        %v849 = vsub.s32 %v622, %v848
        %v850 = vrot.slane %v803, %v849
        %v851 = vsel %vm627, %v850, %v846
        %v852 = vlaneseq
        %v853 = vshrl.u32 %v852, 7
        %v854 = vsub.s32 %v617, %v853
        %v855 = vrot.slane %v806, %v854
        %v856 = vlaneseq
        %v857 = vshrl.u32 %v856, 7
        %v858 = vsub.s32 %v622, %v857
        %v859 = vrot.slane %v809, %v858
        %v860 = vsel %vm627, %v859, %v855
        %v861 = vlaneseq
        %v862 = vshrl.u32 %v861, 7
        %v863 = vsub.s32 %v617, %v862
        %v864 = vrot.slane %v812, %v863
        %v865 = vlaneseq
        %v866 = vshrl.u32 %v865, 7
        %v867 = vsub.s32 %v622, %v866
        %v868 = vrot.slane %v815, %v867
        %v869 = vsel %vm627, %v868, %v864
        %v870 = vlaneseq
        %v871 = vshrl.u32 %v870, 7
        %v872 = vsub.s32 %v617, %v871
        %v873 = vrot.slane %v818, %v872
        %v874 = vlaneseq
        %v875 = vshrl.u32 %v874, 7
        %v876 = vsub.s32 %v622, %v875
        %v877 = vrot.slane %v821, %v876
        %v878 = vsel %vm627, %v877, %v873
        %v879 = vlaneseq
        %v880 = vshrl.u32 %v879, 7
        %v881 = vsub.s32 %v617, %v880
        %v882 = vrot.slane %v824, %v881
        %v883 = vlaneseq
        %v884 = vshrl.u32 %v883, 7
        %v885 = vsub.s32 %v622, %v884
        %v886 = vrot.slane %v827, %v885
        %v887 = vsel %vm627, %v886, %v882
        %v888 = vlaneseq
        %v889 = vshrl.u32 %v888, 7
        %v890 = vsub.s32 %v617, %v889
        %v891 = vrot.slane %v830, %v890
        %v892 = vlaneseq
        %v893 = vshrl.u32 %v892, 7
        %v894 = vsub.s32 %v622, %v893
        %v895 = vrot.slane %v833, %v894
        %v896 = vsel %vm627, %v895, %v891
        %v897 = vsel %vm683, %v851, %v842
        %v898 = vsel %vm685, %v860, %v897
        %v899 = vsel %vm687, %v869, %v898
        %v900 = vsel %vm689, %v878, %v899
        %v901 = vsel %vm691, %v887, %v900
        %v902 = vsel %vm693, %v896, %v901
        %v904 = vsel %vm696, %v902, 0.0
        %905 = vadd.xlane.f32.xlu0 %v904
        %v906 = vpop.xlane.xlu0 %905
        %v908 = vlaneseq
        %v909 = vshrl.u32 %v908, 7
        %v910 = vsub.s32 0, %v909
        %v911 = vrot.slane %v906, %v910
        %v912 = vlaneseq
        %v913 = vshrl.u32 %v912, 7
        %v914 = vsub.s32 1, %v913
        %v915 = vrot.slane %v906, %v914
        %v916 = vlaneseq
        %v917 = vshrl.u32 %v916, 7
        %v918 = vsub.s32 2, %v917
        %v919 = vrot.slane %v906, %v918
        %v920 = vlaneseq
        %v921 = vshrl.u32 %v920, 7
        %v922 = vsub.s32 3, %v921
        %v923 = vrot.slane %v906, %v922
        %v924 = vlaneseq
        %v925 = vshrl.u32 %v924, 7
        %v926 = vsub.s32 4, %v925
        %v927 = vrot.slane %v906, %v926
        %v928 = vlaneseq
        %v929 = vshrl.u32 %v928, 7
        %v930 = vsub.s32 5, %v929
        %v931 = vrot.slane %v906, %v930
        %v932 = vlaneseq
        %v933 = vshrl.u32 %v932, 7
        %v934 = vsub.s32 6, %v933
        %v935 = vrot.slane %v906, %v934
        %v943 = vrcp.pop %v911
        %v944 = vmul.f32 %v751, %v943
        %v945 = vmul.f32 %v753, %v943
        %v946 = vrcp.pop %v915
        %v947 = vmul.f32 %v755, %v946
        %v948 = vmul.f32 %v757, %v946
        %v949 = vrcp.pop %v919
        %v950 = vmul.f32 %v759, %v949
        %v951 = vmul.f32 %v761, %v949
        %v952 = vrcp.pop %v923
        %v953 = vmul.f32 %v763, %v952
        %v954 = vmul.f32 %v765, %v952
        %v955 = vrcp.pop %v927
        %v956 = vmul.f32 %v767, %v955
        %v957 = vmul.f32 %v769, %v955
        %v958 = vrcp.pop %v931
        %v959 = vmul.f32 %v771, %v958
        %v960 = vmul.f32 %v773, %v958
        %v961 = vrcp.pop %v935
        %v962 = vmul.f32 %v775, %v961
        %v963 = vmul.f32 %v777, %v961
        %v978 = vcombine.high %v944, %v944
        %v980 = vunpack.c.l.s4 1983009808
        %v981 = vunpack.c.0.s8 %v980
        %v982 = vlaneseq
        %v983 = vshrl.u32 %v982, 7
        %v984 = vsub.s32 %v981, %v983
        %v985 = vrot.slane %v944, %v984
        %v987 = vunpack.c.l.s4 1983009808
        %v988 = vunpack.c.0.s8 %v987
        %v989 = vlaneseq
        %v990 = vshrl.u32 %v989, 7
        %v991 = vsub.s32 %v988, %v990
        %v992 = vrot.slane %v978, %v991
        %v993 = vcombine.high %v985, %v985
        %v994 = vcombine.high %v992, %v992
        %v995 = vcombine.high %v945, %v945
        %v997 = vunpack.c.l.s4 1983009808
        %v998 = vunpack.c.0.s8 %v997
        %v999 = vlaneseq
        %v1000 = vshrl.u32 %v999, 7
        %v1001 = vsub.s32 %v998, %v1000
        %v1002 = vrot.slane %v945, %v1001
        %v1004 = vunpack.c.l.s4 1983009808
        %v1005 = vunpack.c.0.s8 %v1004
        %v1006 = vlaneseq
        %v1007 = vshrl.u32 %v1006, 7
        %v1008 = vsub.s32 %v1005, %v1007
        %v1009 = vrot.slane %v995, %v1008
        %v1010 = vcombine.high %v1002, %v1002
        %v1011 = vcombine.high %v1009, %v1009
        %v1012 = vcombine.high %v947, %v947
        %v1014 = vunpack.c.l.s4 1983009808
        %v1015 = vunpack.c.0.s8 %v1014
        %v1016 = vlaneseq
        %v1017 = vshrl.u32 %v1016, 7
        %v1018 = vsub.s32 %v1015, %v1017
        %v1019 = vrot.slane %v947, %v1018
        %v1021 = vunpack.c.l.s4 1983009808
        %v1022 = vunpack.c.0.s8 %v1021
        %v1023 = vlaneseq
        %v1024 = vshrl.u32 %v1023, 7
        %v1025 = vsub.s32 %v1022, %v1024
        %v1026 = vrot.slane %v1012, %v1025
        %v1027 = vcombine.high %v1019, %v1019
        %v1028 = vcombine.high %v1026, %v1026
        %v1029 = vcombine.high %v948, %v948
        %v1031 = vunpack.c.l.s4 1983009808
        %v1032 = vunpack.c.0.s8 %v1031
        %v1033 = vlaneseq
        %v1034 = vshrl.u32 %v1033, 7
        %v1035 = vsub.s32 %v1032, %v1034
        %v1036 = vrot.slane %v948, %v1035
        %v1038 = vunpack.c.l.s4 1983009808
        %v1039 = vunpack.c.0.s8 %v1038
        %v1040 = vlaneseq
        %v1041 = vshrl.u32 %v1040, 7
        %v1042 = vsub.s32 %v1039, %v1041
        %v1043 = vrot.slane %v1029, %v1042
        %v1044 = vcombine.high %v1036, %v1036
        %v1045 = vcombine.high %v1043, %v1043
        %v1046 = vcombine.high %v950, %v950
        %v1048 = vunpack.c.l.s4 1983009808
        %v1049 = vunpack.c.0.s8 %v1048
        %v1050 = vlaneseq
        %v1051 = vshrl.u32 %v1050, 7
        %v1052 = vsub.s32 %v1049, %v1051
        %v1053 = vrot.slane %v950, %v1052
        %v1055 = vunpack.c.l.s4 1983009808
        %v1056 = vunpack.c.0.s8 %v1055
        %v1057 = vlaneseq
        %v1058 = vshrl.u32 %v1057, 7
        %v1059 = vsub.s32 %v1056, %v1058
        %v1060 = vrot.slane %v1046, %v1059
        %v1061 = vcombine.high %v1053, %v1053
        %v1062 = vcombine.high %v1060, %v1060
        %v1063 = vcombine.high %v951, %v951
        %v1065 = vunpack.c.l.s4 1983009808
        %v1066 = vunpack.c.0.s8 %v1065
        %v1067 = vlaneseq
        %v1068 = vshrl.u32 %v1067, 7
        %v1069 = vsub.s32 %v1066, %v1068
        %v1070 = vrot.slane %v951, %v1069
        %v1072 = vunpack.c.l.s4 1983009808
        %v1073 = vunpack.c.0.s8 %v1072
        %v1074 = vlaneseq
        %v1075 = vshrl.u32 %v1074, 7
        %v1076 = vsub.s32 %v1073, %v1075
        %v1077 = vrot.slane %v1063, %v1076
        %v1078 = vcombine.high %v1070, %v1070
        %v1079 = vcombine.high %v1077, %v1077
        %v1080 = vcombine.high %v953, %v953
        %v1082 = vunpack.c.l.s4 1983009808
        %v1083 = vunpack.c.0.s8 %v1082
        %v1084 = vlaneseq
        %v1085 = vshrl.u32 %v1084, 7
        %v1086 = vsub.s32 %v1083, %v1085
        %v1087 = vrot.slane %v953, %v1086
        %v1089 = vunpack.c.l.s4 1983009808
        %v1090 = vunpack.c.0.s8 %v1089
        %v1091 = vlaneseq
        %v1092 = vshrl.u32 %v1091, 7
        %v1093 = vsub.s32 %v1090, %v1092
        %v1094 = vrot.slane %v1080, %v1093
        %v1095 = vcombine.high %v1087, %v1087
        %v1096 = vcombine.high %v1094, %v1094
        %v1097 = vcombine.high %v954, %v954
        %v1099 = vunpack.c.l.s4 1983009808
        %v1100 = vunpack.c.0.s8 %v1099
        %v1101 = vlaneseq
        %v1102 = vshrl.u32 %v1101, 7
        %v1103 = vsub.s32 %v1100, %v1102
        %v1104 = vrot.slane %v954, %v1103
        %v1106 = vunpack.c.l.s4 1983009808
        %v1107 = vunpack.c.0.s8 %v1106
        %v1108 = vlaneseq
        %v1109 = vshrl.u32 %v1108, 7
        %v1110 = vsub.s32 %v1107, %v1109
        %v1111 = vrot.slane %v1097, %v1110
        %v1112 = vcombine.high %v1104, %v1104
        %v1113 = vcombine.high %v1111, %v1111
        %v1114 = vcombine.high %v956, %v956
        %v1116 = vunpack.c.l.s4 1983009808
        %v1117 = vunpack.c.0.s8 %v1116
        %v1118 = vlaneseq
        %v1119 = vshrl.u32 %v1118, 7
        %v1120 = vsub.s32 %v1117, %v1119
        %v1121 = vrot.slane %v956, %v1120
        %v1123 = vunpack.c.l.s4 1983009808
        %v1124 = vunpack.c.0.s8 %v1123
        %v1125 = vlaneseq
        %v1126 = vshrl.u32 %v1125, 7
        %v1127 = vsub.s32 %v1124, %v1126
        %v1128 = vrot.slane %v1114, %v1127
        %v1129 = vcombine.high %v1121, %v1121
        %v1130 = vcombine.high %v1128, %v1128
        %v1131 = vcombine.high %v957, %v957
        %v1133 = vunpack.c.l.s4 1983009808
        %v1134 = vunpack.c.0.s8 %v1133
        %v1135 = vlaneseq
        %v1136 = vshrl.u32 %v1135, 7
        %v1137 = vsub.s32 %v1134, %v1136
        %v1138 = vrot.slane %v957, %v1137
        %v1140 = vunpack.c.l.s4 1983009808
        %v1141 = vunpack.c.0.s8 %v1140
        %v1142 = vlaneseq
        %v1143 = vshrl.u32 %v1142, 7
        %v1144 = vsub.s32 %v1141, %v1143
        %v1145 = vrot.slane %v1131, %v1144
        %v1146 = vcombine.high %v1138, %v1138
        %v1147 = vcombine.high %v1145, %v1145
        %v1148 = vcombine.high %v959, %v959
        %v1150 = vunpack.c.l.s4 1983009808
        %v1151 = vunpack.c.0.s8 %v1150
        %v1152 = vlaneseq
        %v1153 = vshrl.u32 %v1152, 7
        %v1154 = vsub.s32 %v1151, %v1153
        %v1155 = vrot.slane %v959, %v1154
        %v1157 = vunpack.c.l.s4 1983009808
        %v1158 = vunpack.c.0.s8 %v1157
        %v1159 = vlaneseq
        %v1160 = vshrl.u32 %v1159, 7
        %v1161 = vsub.s32 %v1158, %v1160
        %v1162 = vrot.slane %v1148, %v1161
        %v1163 = vcombine.high %v1155, %v1155
        %v1164 = vcombine.high %v1162, %v1162
        %v1165 = vcombine.high %v960, %v960
        %v1167 = vunpack.c.l.s4 1983009808
        %v1168 = vunpack.c.0.s8 %v1167
        %v1169 = vlaneseq
        %v1170 = vshrl.u32 %v1169, 7
        %v1171 = vsub.s32 %v1168, %v1170
        %v1172 = vrot.slane %v960, %v1171
        %v1174 = vunpack.c.l.s4 1983009808
        %v1175 = vunpack.c.0.s8 %v1174
        %v1176 = vlaneseq
        %v1177 = vshrl.u32 %v1176, 7
        %v1178 = vsub.s32 %v1175, %v1177
        %v1179 = vrot.slane %v1165, %v1178
        %v1180 = vcombine.high %v1172, %v1172
        %v1181 = vcombine.high %v1179, %v1179
        %v1182 = vcombine.high %v962, %v962
        %v1184 = vunpack.c.l.s4 1983009808
        %v1185 = vunpack.c.0.s8 %v1184
        %v1186 = vlaneseq
        %v1187 = vshrl.u32 %v1186, 7
        %v1188 = vsub.s32 %v1185, %v1187
        %v1189 = vrot.slane %v962, %v1188
        %v1191 = vunpack.c.l.s4 1983009808
        %v1192 = vunpack.c.0.s8 %v1191
        %v1193 = vlaneseq
        %v1194 = vshrl.u32 %v1193, 7
        %v1195 = vsub.s32 %v1192, %v1194
        %v1196 = vrot.slane %v1182, %v1195
        %v1197 = vcombine.high %v1189, %v1189
        %v1198 = vcombine.high %v1196, %v1196
        %v1199 = vcombine.high %v963, %v963
        %v1201 = vunpack.c.l.s4 1983009808
        %v1202 = vunpack.c.0.s8 %v1201
        %v1203 = vlaneseq
        %v1204 = vshrl.u32 %v1203, 7
        %v1205 = vsub.s32 %v1202, %v1204
        %v1206 = vrot.slane %v963, %v1205
        %v1208 = vunpack.c.l.s4 1983009808
        %v1209 = vunpack.c.0.s8 %v1208
        %v1210 = vlaneseq
        %v1211 = vshrl.u32 %v1210, 7
        %v1212 = vsub.s32 %v1209, %v1211
        %v1213 = vrot.slane %v1199, %v1212
        %v1214 = vcombine.high %v1206, %v1206
        %v1215 = vcombine.high %v1213, %v1213
        %v1216 = vld [vmem:[%s276] sm:$0xff]
        %v1217 = vld [vmem:[%s276 + $0x8] sm:$0x3f]
        %v1218 = vld [vmem:[%s276 + $0x10] sm:$0xff]
        %v1219 = vld [vmem:[%s276 + $0x18] sm:$0x3f]
        %v1220 = vld [vmem:[%s276 + $0x20] sm:$0xff]
        %v1221 = vld [vmem:[%s276 + $0x28] sm:$0x3f]
        %v1222 = vld [vmem:[%s276 + $0x30] sm:$0xff]
        %v1223 = vld [vmem:[%s276 + $0x38] sm:$0x3f]
        %v1224 = vld [vmem:[%s276 + $0x40] sm:$0xff]
        %v1225 = vld [vmem:[%s276 + $0x48] sm:$0x3f]
        %v1226 = vld [vmem:[%s276 + $0x50] sm:$0xff]
        %v1227 = vld [vmem:[%s276 + $0x58] sm:$0x3f]
        %v1228 = vld [vmem:[%s276 + $0x60] sm:$0xff]
        %v1229 = vld [vmem:[%s276 + $0x68] sm:$0x3f]
        %v1230 = vld [vmem:[%s276 + $0x70] sm:$0xff]
        %v1231 = vld [vmem:[%s276 + $0x78] sm:$0x3f]
        %1232 = vset.pattern.permute.xlu0 0
        %1233 = vperm.xlu0 %1232, %v985
        %v1234 = vpop.permute.xlu0 %1233
        %v1237 = vunpack.c.l.s4 269488144
        %v1238 = vunpack.c.0.s8 %v1237
        %v1239 = vlaneseq
        %v1240 = vshrl.u32 %v1239, 7
        %v1241 = vsub.s32 %v1238, %v1240
        %v1242 = vrot.slane %v1234, %v1241
        %1243 = vset.pattern.permute.xlu0 0
        %1244 = vperm.xlu0 %1243, %v993
        %v1245 = vpop.permute.xlu0 %1244
        %v1248 = vunpack.c.l.s4 269488144
        %v1249 = vunpack.c.0.s8 %v1248
        %v1250 = vlaneseq
        %v1251 = vshrl.u32 %v1250, 7
        %v1252 = vsub.s32 %v1249, %v1251
        %v1253 = vrot.slane %v1245, %v1252
        %1254 = vset.pattern.permute.xlu0 0
        %1255 = vperm.xlu0 %1254, %v992
        %v1256 = vpop.permute.xlu0 %1255
        %v1259 = vunpack.c.l.s4 269488144
        %v1260 = vunpack.c.0.s8 %v1259
        %v1261 = vlaneseq
        %v1262 = vshrl.u32 %v1261, 7
        %v1263 = vsub.s32 %v1260, %v1262
        %v1264 = vrot.slane %v1256, %v1263
        %1265 = vset.pattern.permute.xlu0 0
        %1266 = vperm.xlu0 %1265, %v994
        %v1267 = vpop.permute.xlu0 %1266
        %v1270 = vunpack.c.l.s4 269488144
        %v1271 = vunpack.c.0.s8 %v1270
        %v1272 = vlaneseq
        %v1273 = vshrl.u32 %v1272, 7
        %v1274 = vsub.s32 %v1271, %v1273
        %v1275 = vrot.slane %v1267, %v1274
        %1276 = vset.pattern.permute.xlu0 0
        %1277 = vperm.xlu0 %1276, %v1002
        %v1278 = vpop.permute.xlu0 %1277
        %v1281 = vunpack.c.l.s4 269488144
        %v1282 = vunpack.c.0.s8 %v1281
        %v1283 = vlaneseq
        %v1284 = vshrl.u32 %v1283, 7
        %v1285 = vsub.s32 %v1282, %v1284
        %v1286 = vrot.slane %v1278, %v1285
        %1287 = vset.pattern.permute.xlu0 0
        %1288 = vperm.xlu0 %1287, %v1010
        %v1289 = vpop.permute.xlu0 %1288
        %v1292 = vunpack.c.l.s4 269488144
        %v1293 = vunpack.c.0.s8 %v1292
        %v1294 = vlaneseq
        %v1295 = vshrl.u32 %v1294, 7
        %v1296 = vsub.s32 %v1293, %v1295
        %v1297 = vrot.slane %v1289, %v1296
        %1298 = vset.pattern.permute.xlu0 0
        %1299 = vperm.xlu0 %1298, %v1009
        %v1300 = vpop.permute.xlu0 %1299
        %v1303 = vunpack.c.l.s4 269488144
        %v1304 = vunpack.c.0.s8 %v1303
        %v1305 = vlaneseq
        %v1306 = vshrl.u32 %v1305, 7
        %v1307 = vsub.s32 %v1304, %v1306
        %v1308 = vrot.slane %v1300, %v1307
        %1309 = vset.pattern.permute.xlu0 0
        %1310 = vperm.xlu0 %1309, %v1011
        %v1311 = vpop.permute.xlu0 %1310
        %v1314 = vunpack.c.l.s4 269488144
        %v1315 = vunpack.c.0.s8 %v1314
        %v1316 = vlaneseq
        %v1317 = vshrl.u32 %v1316, 7
        %v1318 = vsub.s32 %v1315, %v1317
        %v1319 = vrot.slane %v1311, %v1318
        %1320 = vset.pattern.permute.xlu0 0
        %1321 = vperm.xlu0 %1320, %v1019
        %v1322 = vpop.permute.xlu0 %1321
        %v1325 = vunpack.c.l.s4 269488144
        %v1326 = vunpack.c.0.s8 %v1325
        %v1327 = vlaneseq
        %v1328 = vshrl.u32 %v1327, 7
        %v1329 = vsub.s32 %v1326, %v1328
        %v1330 = vrot.slane %v1322, %v1329
        %1331 = vset.pattern.permute.xlu0 0
        %1332 = vperm.xlu0 %1331, %v1027
        %v1333 = vpop.permute.xlu0 %1332
        %v1336 = vunpack.c.l.s4 269488144
        %v1337 = vunpack.c.0.s8 %v1336
        %v1338 = vlaneseq
        %v1339 = vshrl.u32 %v1338, 7
        %v1340 = vsub.s32 %v1337, %v1339
        %v1341 = vrot.slane %v1333, %v1340
        %1342 = vset.pattern.permute.xlu0 0
        %1343 = vperm.xlu0 %1342, %v1026
        %v1344 = vpop.permute.xlu0 %1343
        %v1347 = vunpack.c.l.s4 269488144
        %v1348 = vunpack.c.0.s8 %v1347
        %v1349 = vlaneseq
        %v1350 = vshrl.u32 %v1349, 7
        %v1351 = vsub.s32 %v1348, %v1350
        %v1352 = vrot.slane %v1344, %v1351
        %1353 = vset.pattern.permute.xlu0 0
        %1354 = vperm.xlu0 %1353, %v1028
        %v1355 = vpop.permute.xlu0 %1354
        %v1358 = vunpack.c.l.s4 269488144
        %v1359 = vunpack.c.0.s8 %v1358
        %v1360 = vlaneseq
        %v1361 = vshrl.u32 %v1360, 7
        %v1362 = vsub.s32 %v1359, %v1361
        %v1363 = vrot.slane %v1355, %v1362
        %1364 = vset.pattern.permute.xlu0 0
        %1365 = vperm.xlu0 %1364, %v1036
        %v1366 = vpop.permute.xlu0 %1365
        %v1369 = vunpack.c.l.s4 269488144
        %v1370 = vunpack.c.0.s8 %v1369
        %v1371 = vlaneseq
        %v1372 = vshrl.u32 %v1371, 7
        %v1373 = vsub.s32 %v1370, %v1372
        %v1374 = vrot.slane %v1366, %v1373
        %1375 = vset.pattern.permute.xlu0 0
        %1376 = vperm.xlu0 %1375, %v1044
        %v1377 = vpop.permute.xlu0 %1376
        %v1380 = vunpack.c.l.s4 269488144
        %v1381 = vunpack.c.0.s8 %v1380
        %v1382 = vlaneseq
        %v1383 = vshrl.u32 %v1382, 7
        %v1384 = vsub.s32 %v1381, %v1383
        %v1385 = vrot.slane %v1377, %v1384
        %1386 = vset.pattern.permute.xlu0 0
        %1387 = vperm.xlu0 %1386, %v1043
        %v1388 = vpop.permute.xlu0 %1387
        %v1391 = vunpack.c.l.s4 269488144
        %v1392 = vunpack.c.0.s8 %v1391
        %v1393 = vlaneseq
        %v1394 = vshrl.u32 %v1393, 7
        %v1395 = vsub.s32 %v1392, %v1394
        %v1396 = vrot.slane %v1388, %v1395
        %1397 = vset.pattern.permute.xlu0 0
        %1398 = vperm.xlu0 %1397, %v1045
        %v1399 = vpop.permute.xlu0 %1398
        %v1402 = vunpack.c.l.s4 269488144
        %v1403 = vunpack.c.0.s8 %v1402
        %v1404 = vlaneseq
        %v1405 = vshrl.u32 %v1404, 7
        %v1406 = vsub.s32 %v1403, %v1405
        %v1407 = vrot.slane %v1399, %v1406
        %1408 = vset.pattern.permute.xlu0 0
        %1409 = vperm.xlu0 %1408, %v1053
        %v1410 = vpop.permute.xlu0 %1409
        %v1413 = vunpack.c.l.s4 269488144
        %v1414 = vunpack.c.0.s8 %v1413
        %v1415 = vlaneseq
        %v1416 = vshrl.u32 %v1415, 7
        %v1417 = vsub.s32 %v1414, %v1416
        %v1418 = vrot.slane %v1410, %v1417
        %1419 = vset.pattern.permute.xlu0 0
        %1420 = vperm.xlu0 %1419, %v1061
        %v1421 = vpop.permute.xlu0 %1420
        %v1424 = vunpack.c.l.s4 269488144
        %v1425 = vunpack.c.0.s8 %v1424
        %v1426 = vlaneseq
        %v1427 = vshrl.u32 %v1426, 7
        %v1428 = vsub.s32 %v1425, %v1427
        %v1429 = vrot.slane %v1421, %v1428
        %1430 = vset.pattern.permute.xlu0 0
        %1431 = vperm.xlu0 %1430, %v1060
        %v1432 = vpop.permute.xlu0 %1431
        %v1435 = vunpack.c.l.s4 269488144
        %v1436 = vunpack.c.0.s8 %v1435
        %v1437 = vlaneseq
        %v1438 = vshrl.u32 %v1437, 7
        %v1439 = vsub.s32 %v1436, %v1438
        %v1440 = vrot.slane %v1432, %v1439
        %1441 = vset.pattern.permute.xlu0 0
        %1442 = vperm.xlu0 %1441, %v1062
        %v1443 = vpop.permute.xlu0 %1442
        %v1446 = vunpack.c.l.s4 269488144
        %v1447 = vunpack.c.0.s8 %v1446
        %v1448 = vlaneseq
        %v1449 = vshrl.u32 %v1448, 7
        %v1450 = vsub.s32 %v1447, %v1449
        %v1451 = vrot.slane %v1443, %v1450
        %1452 = vset.pattern.permute.xlu0 0
        %1453 = vperm.xlu0 %1452, %v1070
        %v1454 = vpop.permute.xlu0 %1453
        %v1457 = vunpack.c.l.s4 269488144
        %v1458 = vunpack.c.0.s8 %v1457
        %v1459 = vlaneseq
        %v1460 = vshrl.u32 %v1459, 7
        %v1461 = vsub.s32 %v1458, %v1460
        %v1462 = vrot.slane %v1454, %v1461
        %1463 = vset.pattern.permute.xlu0 0
        %1464 = vperm.xlu0 %1463, %v1078
        %v1465 = vpop.permute.xlu0 %1464
        %v1468 = vunpack.c.l.s4 269488144
        %v1469 = vunpack.c.0.s8 %v1468
        %v1470 = vlaneseq
        %v1471 = vshrl.u32 %v1470, 7
        %v1472 = vsub.s32 %v1469, %v1471
        %v1473 = vrot.slane %v1465, %v1472
        %1474 = vset.pattern.permute.xlu0 0
        %1475 = vperm.xlu0 %1474, %v1077
        %v1476 = vpop.permute.xlu0 %1475
        %v1479 = vunpack.c.l.s4 269488144
        %v1480 = vunpack.c.0.s8 %v1479
        %v1481 = vlaneseq
        %v1482 = vshrl.u32 %v1481, 7
        %v1483 = vsub.s32 %v1480, %v1482
        %v1484 = vrot.slane %v1476, %v1483
        %1485 = vset.pattern.permute.xlu0 0
        %1486 = vperm.xlu0 %1485, %v1079
        %v1487 = vpop.permute.xlu0 %1486
        %v1490 = vunpack.c.l.s4 269488144
        %v1491 = vunpack.c.0.s8 %v1490
        %v1492 = vlaneseq
        %v1493 = vshrl.u32 %v1492, 7
        %v1494 = vsub.s32 %v1491, %v1493
        %v1495 = vrot.slane %v1487, %v1494
        %1496 = vset.pattern.permute.xlu0 0
        %1497 = vperm.xlu0 %1496, %v1087
        %v1498 = vpop.permute.xlu0 %1497
        %v1501 = vunpack.c.l.s4 269488144
        %v1502 = vunpack.c.0.s8 %v1501
        %v1503 = vlaneseq
        %v1504 = vshrl.u32 %v1503, 7
        %v1505 = vsub.s32 %v1502, %v1504
        %v1506 = vrot.slane %v1498, %v1505
        %1507 = vset.pattern.permute.xlu0 0
        %1508 = vperm.xlu0 %1507, %v1095
        %v1509 = vpop.permute.xlu0 %1508
        %v1512 = vunpack.c.l.s4 269488144
        %v1513 = vunpack.c.0.s8 %v1512
        %v1514 = vlaneseq
        %v1515 = vshrl.u32 %v1514, 7
        %v1516 = vsub.s32 %v1513, %v1515
        %v1517 = vrot.slane %v1509, %v1516
        %1518 = vset.pattern.permute.xlu0 0
        %1519 = vperm.xlu0 %1518, %v1094
        %v1520 = vpop.permute.xlu0 %1519
        %v1523 = vunpack.c.l.s4 269488144
        %v1524 = vunpack.c.0.s8 %v1523
        %v1525 = vlaneseq
        %v1526 = vshrl.u32 %v1525, 7
        %v1527 = vsub.s32 %v1524, %v1526
        %v1528 = vrot.slane %v1520, %v1527
        %1529 = vset.pattern.permute.xlu0 0
        %1530 = vperm.xlu0 %1529, %v1096
        %v1531 = vpop.permute.xlu0 %1530
        %v1534 = vunpack.c.l.s4 269488144
        %v1535 = vunpack.c.0.s8 %v1534
        %v1536 = vlaneseq
        %v1537 = vshrl.u32 %v1536, 7
        %v1538 = vsub.s32 %v1535, %v1537
        %v1539 = vrot.slane %v1531, %v1538
        %1540 = vset.pattern.permute.xlu0 0
        %1541 = vperm.xlu0 %1540, %v1104
        %v1542 = vpop.permute.xlu0 %1541
        %v1545 = vunpack.c.l.s4 269488144
        %v1546 = vunpack.c.0.s8 %v1545
        %v1547 = vlaneseq
        %v1548 = vshrl.u32 %v1547, 7
        %v1549 = vsub.s32 %v1546, %v1548
        %v1550 = vrot.slane %v1542, %v1549
        %1551 = vset.pattern.permute.xlu0 0
        %1552 = vperm.xlu0 %1551, %v1112
        %v1553 = vpop.permute.xlu0 %1552
        %v1556 = vunpack.c.l.s4 269488144
        %v1557 = vunpack.c.0.s8 %v1556
        %v1558 = vlaneseq
        %v1559 = vshrl.u32 %v1558, 7
        %v1560 = vsub.s32 %v1557, %v1559
        %v1561 = vrot.slane %v1553, %v1560
        %1562 = vset.pattern.permute.xlu0 0
        %1563 = vperm.xlu0 %1562, %v1111
        %v1564 = vpop.permute.xlu0 %1563
        %v1567 = vunpack.c.l.s4 269488144
        %v1568 = vunpack.c.0.s8 %v1567
        %v1569 = vlaneseq
        %v1570 = vshrl.u32 %v1569, 7
        %v1571 = vsub.s32 %v1568, %v1570
        %v1572 = vrot.slane %v1564, %v1571
        %1573 = vset.pattern.permute.xlu0 0
        %1574 = vperm.xlu0 %1573, %v1113
        %v1575 = vpop.permute.xlu0 %1574
        %v1578 = vunpack.c.l.s4 269488144
        %v1579 = vunpack.c.0.s8 %v1578
        %v1580 = vlaneseq
        %v1581 = vshrl.u32 %v1580, 7
        %v1582 = vsub.s32 %v1579, %v1581
        %v1583 = vrot.slane %v1575, %v1582
        %1584 = vset.pattern.permute.xlu0 0
        %1585 = vperm.xlu0 %1584, %v1121
        %v1586 = vpop.permute.xlu0 %1585
        %v1589 = vunpack.c.l.s4 269488144
        %v1590 = vunpack.c.0.s8 %v1589
        %v1591 = vlaneseq
        %v1592 = vshrl.u32 %v1591, 7
        %v1593 = vsub.s32 %v1590, %v1592
        %v1594 = vrot.slane %v1586, %v1593
        %1595 = vset.pattern.permute.xlu0 0
        %1596 = vperm.xlu0 %1595, %v1129
        %v1597 = vpop.permute.xlu0 %1596
        %v1600 = vunpack.c.l.s4 269488144
        %v1601 = vunpack.c.0.s8 %v1600
        %v1602 = vlaneseq
        %v1603 = vshrl.u32 %v1602, 7
        %v1604 = vsub.s32 %v1601, %v1603
        %v1605 = vrot.slane %v1597, %v1604
        %1606 = vset.pattern.permute.xlu0 0
        %1607 = vperm.xlu0 %1606, %v1128
        %v1608 = vpop.permute.xlu0 %1607
        %v1611 = vunpack.c.l.s4 269488144
        %v1612 = vunpack.c.0.s8 %v1611
        %v1613 = vlaneseq
        %v1614 = vshrl.u32 %v1613, 7
        %v1615 = vsub.s32 %v1612, %v1614
        %v1616 = vrot.slane %v1608, %v1615
        %1617 = vset.pattern.permute.xlu0 0
        %1618 = vperm.xlu0 %1617, %v1130
        %v1619 = vpop.permute.xlu0 %1618
        %v1622 = vunpack.c.l.s4 269488144
        %v1623 = vunpack.c.0.s8 %v1622
        %v1624 = vlaneseq
        %v1625 = vshrl.u32 %v1624, 7
        %v1626 = vsub.s32 %v1623, %v1625
        %v1627 = vrot.slane %v1619, %v1626
        %1628 = vset.pattern.permute.xlu0 0
        %1629 = vperm.xlu0 %1628, %v1138
        %v1630 = vpop.permute.xlu0 %1629
        %v1633 = vunpack.c.l.s4 269488144
        %v1634 = vunpack.c.0.s8 %v1633
        %v1635 = vlaneseq
        %v1636 = vshrl.u32 %v1635, 7
        %v1637 = vsub.s32 %v1634, %v1636
        %v1638 = vrot.slane %v1630, %v1637
        %1639 = vset.pattern.permute.xlu0 0
        %1640 = vperm.xlu0 %1639, %v1146
        %v1641 = vpop.permute.xlu0 %1640
        %v1644 = vunpack.c.l.s4 269488144
        %v1645 = vunpack.c.0.s8 %v1644
        %v1646 = vlaneseq
        %v1647 = vshrl.u32 %v1646, 7
        %v1648 = vsub.s32 %v1645, %v1647
        %v1649 = vrot.slane %v1641, %v1648
        %1650 = vset.pattern.permute.xlu0 0
        %1651 = vperm.xlu0 %1650, %v1145
        %v1652 = vpop.permute.xlu0 %1651
        %v1655 = vunpack.c.l.s4 269488144
        %v1656 = vunpack.c.0.s8 %v1655
        %v1657 = vlaneseq
        %v1658 = vshrl.u32 %v1657, 7
        %v1659 = vsub.s32 %v1656, %v1658
        %v1660 = vrot.slane %v1652, %v1659
        %1661 = vset.pattern.permute.xlu0 0
        %1662 = vperm.xlu0 %1661, %v1147
        %v1663 = vpop.permute.xlu0 %1662
        %v1666 = vunpack.c.l.s4 269488144
        %v1667 = vunpack.c.0.s8 %v1666
        %v1668 = vlaneseq
        %v1669 = vshrl.u32 %v1668, 7
        %v1670 = vsub.s32 %v1667, %v1669
        %v1671 = vrot.slane %v1663, %v1670
        %1672 = vset.pattern.permute.xlu0 0
        %1673 = vperm.xlu0 %1672, %v1155
        %v1674 = vpop.permute.xlu0 %1673
        %v1677 = vunpack.c.l.s4 269488144
        %v1678 = vunpack.c.0.s8 %v1677
        %v1679 = vlaneseq
        %v1680 = vshrl.u32 %v1679, 7
        %v1681 = vsub.s32 %v1678, %v1680
        %v1682 = vrot.slane %v1674, %v1681
        %1683 = vset.pattern.permute.xlu0 0
        %1684 = vperm.xlu0 %1683, %v1163
        %v1685 = vpop.permute.xlu0 %1684
        %v1688 = vunpack.c.l.s4 269488144
        %v1689 = vunpack.c.0.s8 %v1688
        %v1690 = vlaneseq
        %v1691 = vshrl.u32 %v1690, 7
        %v1692 = vsub.s32 %v1689, %v1691
        %v1693 = vrot.slane %v1685, %v1692
        %1694 = vset.pattern.permute.xlu0 0
        %1695 = vperm.xlu0 %1694, %v1162
        %v1696 = vpop.permute.xlu0 %1695
        %v1699 = vunpack.c.l.s4 269488144
        %v1700 = vunpack.c.0.s8 %v1699
        %v1701 = vlaneseq
        %v1702 = vshrl.u32 %v1701, 7
        %v1703 = vsub.s32 %v1700, %v1702
        %v1704 = vrot.slane %v1696, %v1703
        %1705 = vset.pattern.permute.xlu0 0
        %1706 = vperm.xlu0 %1705, %v1164
        %v1707 = vpop.permute.xlu0 %1706
        %v1710 = vunpack.c.l.s4 269488144
        %v1711 = vunpack.c.0.s8 %v1710
        %v1712 = vlaneseq
        %v1713 = vshrl.u32 %v1712, 7
        %v1714 = vsub.s32 %v1711, %v1713
        %v1715 = vrot.slane %v1707, %v1714
        %1716 = vset.pattern.permute.xlu0 0
        %1717 = vperm.xlu0 %1716, %v1172
        %v1718 = vpop.permute.xlu0 %1717
        %v1721 = vunpack.c.l.s4 269488144
        %v1722 = vunpack.c.0.s8 %v1721
        %v1723 = vlaneseq
        %v1724 = vshrl.u32 %v1723, 7
        %v1725 = vsub.s32 %v1722, %v1724
        %v1726 = vrot.slane %v1718, %v1725
        %1727 = vset.pattern.permute.xlu0 0
        %1728 = vperm.xlu0 %1727, %v1180
        %v1729 = vpop.permute.xlu0 %1728
        %v1732 = vunpack.c.l.s4 269488144
        %v1733 = vunpack.c.0.s8 %v1732
        %v1734 = vlaneseq
        %v1735 = vshrl.u32 %v1734, 7
        %v1736 = vsub.s32 %v1733, %v1735
        %v1737 = vrot.slane %v1729, %v1736
        %1738 = vset.pattern.permute.xlu0 0
        %1739 = vperm.xlu0 %1738, %v1179
        %v1740 = vpop.permute.xlu0 %1739
        %v1743 = vunpack.c.l.s4 269488144
        %v1744 = vunpack.c.0.s8 %v1743
        %v1745 = vlaneseq
        %v1746 = vshrl.u32 %v1745, 7
        %v1747 = vsub.s32 %v1744, %v1746
        %v1748 = vrot.slane %v1740, %v1747
        %1749 = vset.pattern.permute.xlu0 0
        %1750 = vperm.xlu0 %1749, %v1181
        %v1751 = vpop.permute.xlu0 %1750
        %v1754 = vunpack.c.l.s4 269488144
        %v1755 = vunpack.c.0.s8 %v1754
        %v1756 = vlaneseq
        %v1757 = vshrl.u32 %v1756, 7
        %v1758 = vsub.s32 %v1755, %v1757
        %v1759 = vrot.slane %v1751, %v1758
        %1760 = vset.pattern.permute.xlu0 0
        %1761 = vperm.xlu0 %1760, %v1189
        %v1762 = vpop.permute.xlu0 %1761
        %v1765 = vunpack.c.l.s4 269488144
        %v1766 = vunpack.c.0.s8 %v1765
        %v1767 = vlaneseq
        %v1768 = vshrl.u32 %v1767, 7
        %v1769 = vsub.s32 %v1766, %v1768
        %v1770 = vrot.slane %v1762, %v1769
        %1771 = vset.pattern.permute.xlu0 0
        %1772 = vperm.xlu0 %1771, %v1197
        %v1773 = vpop.permute.xlu0 %1772
        %v1776 = vunpack.c.l.s4 269488144
        %v1777 = vunpack.c.0.s8 %v1776
        %v1778 = vlaneseq
        %v1779 = vshrl.u32 %v1778, 7
        %v1780 = vsub.s32 %v1777, %v1779
        %v1781 = vrot.slane %v1773, %v1780
        %1782 = vset.pattern.permute.xlu0 0
        %1783 = vperm.xlu0 %1782, %v1196
        %v1784 = vpop.permute.xlu0 %1783
        %v1787 = vunpack.c.l.s4 269488144
        %v1788 = vunpack.c.0.s8 %v1787
        %v1789 = vlaneseq
        %v1790 = vshrl.u32 %v1789, 7
        %v1791 = vsub.s32 %v1788, %v1790
        %v1792 = vrot.slane %v1784, %v1791
        %1793 = vset.pattern.permute.xlu0 0
        %1794 = vperm.xlu0 %1793, %v1198
        %v1795 = vpop.permute.xlu0 %1794
        %v1798 = vunpack.c.l.s4 269488144
        %v1799 = vunpack.c.0.s8 %v1798
        %v1800 = vlaneseq
        %v1801 = vshrl.u32 %v1800, 7
        %v1802 = vsub.s32 %v1799, %v1801
        %v1803 = vrot.slane %v1795, %v1802
        %1804 = vset.pattern.permute.xlu0 0
        %1805 = vperm.xlu0 %1804, %v1206
        %v1806 = vpop.permute.xlu0 %1805
        %v1809 = vunpack.c.l.s4 269488144
        %v1810 = vunpack.c.0.s8 %v1809
        %v1811 = vlaneseq
        %v1812 = vshrl.u32 %v1811, 7
        %v1813 = vsub.s32 %v1810, %v1812
        %v1814 = vrot.slane %v1806, %v1813
        %1815 = vset.pattern.permute.xlu0 0
        %1816 = vperm.xlu0 %1815, %v1214
        %v1817 = vpop.permute.xlu0 %1816
        %v1820 = vunpack.c.l.s4 269488144
        %v1821 = vunpack.c.0.s8 %v1820
        %v1822 = vlaneseq
        %v1823 = vshrl.u32 %v1822, 7
        %v1824 = vsub.s32 %v1821, %v1823
        %v1825 = vrot.slane %v1817, %v1824
        %1826 = vset.pattern.permute.xlu0 0
        %1827 = vperm.xlu0 %1826, %v1213
        %v1828 = vpop.permute.xlu0 %1827
        %v1831 = vunpack.c.l.s4 269488144
        %v1832 = vunpack.c.0.s8 %v1831
        %v1833 = vlaneseq
        %v1834 = vshrl.u32 %v1833, 7
        %v1835 = vsub.s32 %v1832, %v1834
        %v1836 = vrot.slane %v1828, %v1835
        %1837 = vset.pattern.permute.xlu0 0
        %1838 = vperm.xlu0 %1837, %v1215
        %v1839 = vpop.permute.xlu0 %1838
        %v1842 = vunpack.c.l.s4 269488144
        %v1843 = vunpack.c.0.s8 %v1842
        %v1844 = vlaneseq
        %v1845 = vshrl.u32 %v1844, 7
        %v1846 = vsub.s32 %v1843, %v1845
        %v1847 = vrot.slane %v1839, %v1846
        %v1864 = vcombine.high %v1216, %v1216
        %v1866 = vunpack.c.l.s4 1983009808
        %v1867 = vunpack.c.0.s8 %v1866
        %v1868 = vlaneseq
        %v1869 = vshrl.u32 %v1868, 7
        %v1870 = vsub.s32 %v1867, %v1869
        %v1871 = vrot.slane %v1216, %v1870
        %v1873 = vunpack.c.l.s4 1983009808
        %v1874 = vunpack.c.0.s8 %v1873
        %v1875 = vlaneseq
        %v1876 = vshrl.u32 %v1875, 7
        %v1877 = vsub.s32 %v1874, %v1876
        %v1878 = vrot.slane %v1864, %v1877
        %v1879 = vcombine.high %v1871, %v1871
        %v1880 = vcombine.high %v1878, %v1878
        %v1881 = vcombine.high %v1217, %v1217
        %v1883 = vunpack.c.l.s4 1983009808
        %v1884 = vunpack.c.0.s8 %v1883
        %v1885 = vlaneseq
        %v1886 = vshrl.u32 %v1885, 7
        %v1887 = vsub.s32 %v1884, %v1886
        %v1888 = vrot.slane %v1217, %v1887
        %v1890 = vunpack.c.l.s4 1983009808
        %v1891 = vunpack.c.0.s8 %v1890
        %v1892 = vlaneseq
        %v1893 = vshrl.u32 %v1892, 7
        %v1894 = vsub.s32 %v1891, %v1893
        %v1895 = vrot.slane %v1881, %v1894
        %v1896 = vcombine.high %v1888, %v1888
        %v1897 = vcombine.high %v1218, %v1218
        %v1899 = vunpack.c.l.s4 1983009808
        %v1900 = vunpack.c.0.s8 %v1899
        %v1901 = vlaneseq
        %v1902 = vshrl.u32 %v1901, 7
        %v1903 = vsub.s32 %v1900, %v1902
        %v1904 = vrot.slane %v1218, %v1903
        %v1906 = vunpack.c.l.s4 1983009808
        %v1907 = vunpack.c.0.s8 %v1906
        %v1908 = vlaneseq
        %v1909 = vshrl.u32 %v1908, 7
        %v1910 = vsub.s32 %v1907, %v1909
        %v1911 = vrot.slane %v1897, %v1910
        %v1912 = vcombine.high %v1904, %v1904
        %v1913 = vcombine.high %v1911, %v1911
        %v1914 = vcombine.high %v1219, %v1219
        %v1916 = vunpack.c.l.s4 1983009808
        %v1917 = vunpack.c.0.s8 %v1916
        %v1918 = vlaneseq
        %v1919 = vshrl.u32 %v1918, 7
        %v1920 = vsub.s32 %v1917, %v1919
        %v1921 = vrot.slane %v1219, %v1920
        %v1923 = vunpack.c.l.s4 1983009808
        %v1924 = vunpack.c.0.s8 %v1923
        %v1925 = vlaneseq
        %v1926 = vshrl.u32 %v1925, 7
        %v1927 = vsub.s32 %v1924, %v1926
        %v1928 = vrot.slane %v1914, %v1927
        %v1929 = vcombine.high %v1921, %v1921
        %v1930 = vcombine.high %v1220, %v1220
        %v1932 = vunpack.c.l.s4 1983009808
        %v1933 = vunpack.c.0.s8 %v1932
        %v1934 = vlaneseq
        %v1935 = vshrl.u32 %v1934, 7
        %v1936 = vsub.s32 %v1933, %v1935
        %v1937 = vrot.slane %v1220, %v1936
        %v1939 = vunpack.c.l.s4 1983009808
        %v1940 = vunpack.c.0.s8 %v1939
        %v1941 = vlaneseq
        %v1942 = vshrl.u32 %v1941, 7
        %v1943 = vsub.s32 %v1940, %v1942
        %v1944 = vrot.slane %v1930, %v1943
        %v1945 = vcombine.high %v1937, %v1937
        %v1946 = vcombine.high %v1944, %v1944
        %v1947 = vcombine.high %v1221, %v1221
        %v1949 = vunpack.c.l.s4 1983009808
        %v1950 = vunpack.c.0.s8 %v1949
        %v1951 = vlaneseq
        %v1952 = vshrl.u32 %v1951, 7
        %v1953 = vsub.s32 %v1950, %v1952
        %v1954 = vrot.slane %v1221, %v1953
        %v1956 = vunpack.c.l.s4 1983009808
        %v1957 = vunpack.c.0.s8 %v1956
        %v1958 = vlaneseq
        %v1959 = vshrl.u32 %v1958, 7
        %v1960 = vsub.s32 %v1957, %v1959
        %v1961 = vrot.slane %v1947, %v1960
        %v1962 = vcombine.high %v1954, %v1954
        %v1963 = vcombine.high %v1222, %v1222
        %v1965 = vunpack.c.l.s4 1983009808
        %v1966 = vunpack.c.0.s8 %v1965
        %v1967 = vlaneseq
        %v1968 = vshrl.u32 %v1967, 7
        %v1969 = vsub.s32 %v1966, %v1968
        %v1970 = vrot.slane %v1222, %v1969
        %v1972 = vunpack.c.l.s4 1983009808
        %v1973 = vunpack.c.0.s8 %v1972
        %v1974 = vlaneseq
        %v1975 = vshrl.u32 %v1974, 7
        %v1976 = vsub.s32 %v1973, %v1975
        %v1977 = vrot.slane %v1963, %v1976
        %v1978 = vcombine.high %v1970, %v1970
        %v1979 = vcombine.high %v1977, %v1977
        %v1980 = vcombine.high %v1223, %v1223
        %v1982 = vunpack.c.l.s4 1983009808
        %v1983 = vunpack.c.0.s8 %v1982
        %v1984 = vlaneseq
        %v1985 = vshrl.u32 %v1984, 7
        %v1986 = vsub.s32 %v1983, %v1985
        %v1987 = vrot.slane %v1223, %v1986
        %v1989 = vunpack.c.l.s4 1983009808
        %v1990 = vunpack.c.0.s8 %v1989
        %v1991 = vlaneseq
        %v1992 = vshrl.u32 %v1991, 7
        %v1993 = vsub.s32 %v1990, %v1992
        %v1994 = vrot.slane %v1980, %v1993
        %v1995 = vcombine.high %v1987, %v1987
        %v1996 = vcombine.high %v1224, %v1224
        %v1998 = vunpack.c.l.s4 1983009808
        %v1999 = vunpack.c.0.s8 %v1998
        %v2000 = vlaneseq
        %v2001 = vshrl.u32 %v2000, 7
        %v2002 = vsub.s32 %v1999, %v2001
        %v2003 = vrot.slane %v1224, %v2002
        %v2005 = vunpack.c.l.s4 1983009808
        %v2006 = vunpack.c.0.s8 %v2005
        %v2007 = vlaneseq
        %v2008 = vshrl.u32 %v2007, 7
        %v2009 = vsub.s32 %v2006, %v2008
        %v2010 = vrot.slane %v1996, %v2009
        %v2011 = vcombine.high %v2003, %v2003
        %v2012 = vcombine.high %v2010, %v2010
        %v2013 = vcombine.high %v1225, %v1225
        %v2015 = vunpack.c.l.s4 1983009808
        %v2016 = vunpack.c.0.s8 %v2015
        %v2017 = vlaneseq
        %v2018 = vshrl.u32 %v2017, 7
        %v2019 = vsub.s32 %v2016, %v2018
        %v2020 = vrot.slane %v1225, %v2019
        %v2022 = vunpack.c.l.s4 1983009808
        %v2023 = vunpack.c.0.s8 %v2022
        %v2024 = vlaneseq
        %v2025 = vshrl.u32 %v2024, 7
        %v2026 = vsub.s32 %v2023, %v2025
        %v2027 = vrot.slane %v2013, %v2026
        %v2028 = vcombine.high %v2020, %v2020
        %v2029 = vcombine.high %v1226, %v1226
        %v2031 = vunpack.c.l.s4 1983009808
        %v2032 = vunpack.c.0.s8 %v2031
        %v2033 = vlaneseq
        %v2034 = vshrl.u32 %v2033, 7
        %v2035 = vsub.s32 %v2032, %v2034
        %v2036 = vrot.slane %v1226, %v2035
        %v2038 = vunpack.c.l.s4 1983009808
        %v2039 = vunpack.c.0.s8 %v2038
        %v2040 = vlaneseq
        %v2041 = vshrl.u32 %v2040, 7
        %v2042 = vsub.s32 %v2039, %v2041
        %v2043 = vrot.slane %v2029, %v2042
        %v2044 = vcombine.high %v2036, %v2036
        %v2045 = vcombine.high %v2043, %v2043
        %v2046 = vcombine.high %v1227, %v1227
        %v2048 = vunpack.c.l.s4 1983009808
        %v2049 = vunpack.c.0.s8 %v2048
        %v2050 = vlaneseq
        %v2051 = vshrl.u32 %v2050, 7
        %v2052 = vsub.s32 %v2049, %v2051
        %v2053 = vrot.slane %v1227, %v2052
        %v2055 = vunpack.c.l.s4 1983009808
        %v2056 = vunpack.c.0.s8 %v2055
        %v2057 = vlaneseq
        %v2058 = vshrl.u32 %v2057, 7
        %v2059 = vsub.s32 %v2056, %v2058
        %v2060 = vrot.slane %v2046, %v2059
        %v2061 = vcombine.high %v2053, %v2053
        %v2062 = vcombine.high %v1228, %v1228
        %v2064 = vunpack.c.l.s4 1983009808
        %v2065 = vunpack.c.0.s8 %v2064
        %v2066 = vlaneseq
        %v2067 = vshrl.u32 %v2066, 7
        %v2068 = vsub.s32 %v2065, %v2067
        %v2069 = vrot.slane %v1228, %v2068
        %v2071 = vunpack.c.l.s4 1983009808
        %v2072 = vunpack.c.0.s8 %v2071
        %v2073 = vlaneseq
        %v2074 = vshrl.u32 %v2073, 7
        %v2075 = vsub.s32 %v2072, %v2074
        %v2076 = vrot.slane %v2062, %v2075
        %v2077 = vcombine.high %v2069, %v2069
        %v2078 = vcombine.high %v2076, %v2076
        %v2079 = vcombine.high %v1229, %v1229
        %v2081 = vunpack.c.l.s4 1983009808
        %v2082 = vunpack.c.0.s8 %v2081
        %v2083 = vlaneseq
        %v2084 = vshrl.u32 %v2083, 7
        %v2085 = vsub.s32 %v2082, %v2084
        %v2086 = vrot.slane %v1229, %v2085
        %v2088 = vunpack.c.l.s4 1983009808
        %v2089 = vunpack.c.0.s8 %v2088
        %v2090 = vlaneseq
        %v2091 = vshrl.u32 %v2090, 7
        %v2092 = vsub.s32 %v2089, %v2091
        %v2093 = vrot.slane %v2079, %v2092
        %v2094 = vcombine.high %v2086, %v2086
        %v2095 = vcombine.high %v1230, %v1230
        %v2097 = vunpack.c.l.s4 1983009808
        %v2098 = vunpack.c.0.s8 %v2097
        %v2099 = vlaneseq
        %v2100 = vshrl.u32 %v2099, 7
        %v2101 = vsub.s32 %v2098, %v2100
        %v2102 = vrot.slane %v1230, %v2101
        %v2104 = vunpack.c.l.s4 1983009808
        %v2105 = vunpack.c.0.s8 %v2104
        %v2106 = vlaneseq
        %v2107 = vshrl.u32 %v2106, 7
        %v2108 = vsub.s32 %v2105, %v2107
        %v2109 = vrot.slane %v2095, %v2108
        %v2110 = vcombine.high %v2102, %v2102
        %v2111 = vcombine.high %v2109, %v2109
        %v2112 = vcombine.high %v1231, %v1231
        %v2114 = vunpack.c.l.s4 1983009808
        %v2115 = vunpack.c.0.s8 %v2114
        %v2116 = vlaneseq
        %v2117 = vshrl.u32 %v2116, 7
        %v2118 = vsub.s32 %v2115, %v2117
        %v2119 = vrot.slane %v1231, %v2118
        %v2121 = vunpack.c.l.s4 1983009808
        %v2122 = vunpack.c.0.s8 %v2121
        %v2123 = vlaneseq
        %v2124 = vshrl.u32 %v2123, 7
        %v2125 = vsub.s32 %v2122, %v2124
        %v2126 = vrot.slane %v2112, %v2125
        %v2127 = vcombine.high %v2119, %v2119
        %v2184 = vmul.f32 %v1242, %v1871
        %v2185 = vmul.f32 %v1253, %v1879
        %v2186 = vmul.f32 %v1264, %v1878
        %v2187 = vmul.f32 %v1275, %v1880
        %v2188 = vmul.f32 %v1286, %v1888
        %v2189 = vmul.f32 %v1297, %v1896
        %v2190 = vmul.f32 %v1308, %v1895
        %v2191 = vmul.f32 %v1319, %v1904
        %v2192 = vmul.f32 %v1330, %v1912
        %v2193 = vmul.f32 %v1341, %v1911
        %v2194 = vmul.f32 %v1352, %v1913
        %v2195 = vmul.f32 %v1363, %v1921
        %v2196 = vmul.f32 %v1374, %v1929
        %v2197 = vmul.f32 %v1385, %v1928
        %v2198 = vmul.f32 %v1396, %v1937
        %v2199 = vmul.f32 %v1407, %v1945
        %v2200 = vmul.f32 %v1418, %v1944
        %v2201 = vmul.f32 %v1429, %v1946
        %v2202 = vmul.f32 %v1440, %v1954
        %v2203 = vmul.f32 %v1451, %v1962
        %v2204 = vmul.f32 %v1462, %v1961
        %v2205 = vmul.f32 %v1473, %v1970
        %v2206 = vmul.f32 %v1484, %v1978
        %v2207 = vmul.f32 %v1495, %v1977
        %v2208 = vmul.f32 %v1506, %v1979
        %v2209 = vmul.f32 %v1517, %v1987
        %v2210 = vmul.f32 %v1528, %v1995
        %v2211 = vmul.f32 %v1539, %v1994
        %v2212 = vmul.f32 %v1550, %v2003
        %v2213 = vmul.f32 %v1561, %v2011
        %v2214 = vmul.f32 %v1572, %v2010
        %v2215 = vmul.f32 %v1583, %v2012
        %v2216 = vmul.f32 %v1594, %v2020
        %v2217 = vmul.f32 %v1605, %v2028
        %v2218 = vmul.f32 %v1616, %v2027
        %v2219 = vmul.f32 %v1627, %v2036
        %v2220 = vmul.f32 %v1638, %v2044
        %v2221 = vmul.f32 %v1649, %v2043
        %v2222 = vmul.f32 %v1660, %v2045
        %v2223 = vmul.f32 %v1671, %v2053
        %v2224 = vmul.f32 %v1682, %v2061
        %v2225 = vmul.f32 %v1693, %v2060
        %v2226 = vmul.f32 %v1704, %v2069
        %v2227 = vmul.f32 %v1715, %v2077
        %v2228 = vmul.f32 %v1726, %v2076
        %v2229 = vmul.f32 %v1737, %v2078
        %v2230 = vmul.f32 %v1748, %v2086
        %v2231 = vmul.f32 %v1759, %v2094
        %v2232 = vmul.f32 %v1770, %v2093
        %v2233 = vmul.f32 %v1781, %v2102
        %v2234 = vmul.f32 %v1792, %v2110
        %v2235 = vmul.f32 %v1803, %v2109
        %v2236 = vmul.f32 %v1814, %v2111
        %v2237 = vmul.f32 %v1825, %v2119
        %v2238 = vmul.f32 %v1836, %v2127
        %v2239 = vmul.f32 %v1847, %v2126
        %v2296 = vcombine.low %v2184, %v2185
        %v2297 = vcombine.low %v2186, %v2187
        %v2299 = vunpack.c.l.s4 1983009808
        %v2300 = vunpack.c.0.s8 %v2299
        %v2301 = vlaneseq
        %v2302 = vshrl.u32 %v2301, 7
        %v2303 = vsub.s32 %v2300, %v2302
        %v2304 = vrot.slane %v2296, %v2303
        %v2306 = vunpack.c.l.s4 1983009808
        %v2307 = vunpack.c.0.s8 %v2306
        %v2308 = vlaneseq
        %v2309 = vshrl.u32 %v2308, 7
        %v2310 = vsub.s32 %v2307, %v2309
        %v2311 = vrot.slane %v2297, %v2310
        %v2312 = vcombine.low %v2304, %v2311
        %v2313 = vcombine.low %v2188, %v2189
        %v2315 = vunpack.c.l.s4 1983009808
        %v2316 = vunpack.c.0.s8 %v2315
        %v2317 = vlaneseq
        %v2318 = vshrl.u32 %v2317, 7
        %v2319 = vsub.s32 %v2316, %v2318
        %v2320 = vrot.slane %v2313, %v2319
        %v2322 = vunpack.c.l.s4 1983009808
        %v2323 = vunpack.c.0.s8 %v2322
        %v2324 = vlaneseq
        %v2325 = vshrl.u32 %v2324, 7
        %v2326 = vsub.s32 %v2323, %v2325
        %v2327 = vrot.slane %v2190, %v2326
        %v2328 = vcombine.low %v2320, %v2327
        %v2329 = vcombine.low %v2191, %v2192
        %v2330 = vcombine.low %v2193, %v2194
        %v2332 = vunpack.c.l.s4 1983009808
        %v2333 = vunpack.c.0.s8 %v2332
        %v2334 = vlaneseq
        %v2335 = vshrl.u32 %v2334, 7
        %v2336 = vsub.s32 %v2333, %v2335
        %v2337 = vrot.slane %v2329, %v2336
        %v2339 = vunpack.c.l.s4 1983009808
        %v2340 = vunpack.c.0.s8 %v2339
        %v2341 = vlaneseq
        %v2342 = vshrl.u32 %v2341, 7
        %v2343 = vsub.s32 %v2340, %v2342
        %v2344 = vrot.slane %v2330, %v2343
        %v2345 = vcombine.low %v2337, %v2344
        %v2346 = vcombine.low %v2195, %v2196
        %v2348 = vunpack.c.l.s4 1983009808
        %v2349 = vunpack.c.0.s8 %v2348
        %v2350 = vlaneseq
        %v2351 = vshrl.u32 %v2350, 7
        %v2352 = vsub.s32 %v2349, %v2351
        %v2353 = vrot.slane %v2346, %v2352
        %v2355 = vunpack.c.l.s4 1983009808
        %v2356 = vunpack.c.0.s8 %v2355
        %v2357 = vlaneseq
        %v2358 = vshrl.u32 %v2357, 7
        %v2359 = vsub.s32 %v2356, %v2358
        %v2360 = vrot.slane %v2197, %v2359
        %v2361 = vcombine.low %v2353, %v2360
        %v2362 = vcombine.low %v2198, %v2199
        %v2363 = vcombine.low %v2200, %v2201
        %v2365 = vunpack.c.l.s4 1983009808
        %v2366 = vunpack.c.0.s8 %v2365
        %v2367 = vlaneseq
        %v2368 = vshrl.u32 %v2367, 7
        %v2369 = vsub.s32 %v2366, %v2368
        %v2370 = vrot.slane %v2362, %v2369
        %v2372 = vunpack.c.l.s4 1983009808
        %v2373 = vunpack.c.0.s8 %v2372
        %v2374 = vlaneseq
        %v2375 = vshrl.u32 %v2374, 7
        %v2376 = vsub.s32 %v2373, %v2375
        %v2377 = vrot.slane %v2363, %v2376
        %v2378 = vcombine.low %v2370, %v2377
        %v2379 = vcombine.low %v2202, %v2203
        %v2381 = vunpack.c.l.s4 1983009808
        %v2382 = vunpack.c.0.s8 %v2381
        %v2383 = vlaneseq
        %v2384 = vshrl.u32 %v2383, 7
        %v2385 = vsub.s32 %v2382, %v2384
        %v2386 = vrot.slane %v2379, %v2385
        %v2388 = vunpack.c.l.s4 1983009808
        %v2389 = vunpack.c.0.s8 %v2388
        %v2390 = vlaneseq
        %v2391 = vshrl.u32 %v2390, 7
        %v2392 = vsub.s32 %v2389, %v2391
        %v2393 = vrot.slane %v2204, %v2392
        %v2394 = vcombine.low %v2386, %v2393
        %v2395 = vcombine.low %v2205, %v2206
        %v2396 = vcombine.low %v2207, %v2208
        %v2398 = vunpack.c.l.s4 1983009808
        %v2399 = vunpack.c.0.s8 %v2398
        %v2400 = vlaneseq
        %v2401 = vshrl.u32 %v2400, 7
        %v2402 = vsub.s32 %v2399, %v2401
        %v2403 = vrot.slane %v2395, %v2402
        %v2405 = vunpack.c.l.s4 1983009808
        %v2406 = vunpack.c.0.s8 %v2405
        %v2407 = vlaneseq
        %v2408 = vshrl.u32 %v2407, 7
        %v2409 = vsub.s32 %v2406, %v2408
        %v2410 = vrot.slane %v2396, %v2409
        %v2411 = vcombine.low %v2403, %v2410
        %v2412 = vcombine.low %v2209, %v2210
        %v2414 = vunpack.c.l.s4 1983009808
        %v2415 = vunpack.c.0.s8 %v2414
        %v2416 = vlaneseq
        %v2417 = vshrl.u32 %v2416, 7
        %v2418 = vsub.s32 %v2415, %v2417
        %v2419 = vrot.slane %v2412, %v2418
        %v2421 = vunpack.c.l.s4 1983009808
        %v2422 = vunpack.c.0.s8 %v2421
        %v2423 = vlaneseq
        %v2424 = vshrl.u32 %v2423, 7
        %v2425 = vsub.s32 %v2422, %v2424
        %v2426 = vrot.slane %v2211, %v2425
        %v2427 = vcombine.low %v2419, %v2426
        %v2428 = vcombine.low %v2212, %v2213
        %v2429 = vcombine.low %v2214, %v2215
        %v2431 = vunpack.c.l.s4 1983009808
        %v2432 = vunpack.c.0.s8 %v2431
        %v2433 = vlaneseq
        %v2434 = vshrl.u32 %v2433, 7
        %v2435 = vsub.s32 %v2432, %v2434
        %v2436 = vrot.slane %v2428, %v2435
        %v2438 = vunpack.c.l.s4 1983009808
        %v2439 = vunpack.c.0.s8 %v2438
        %v2440 = vlaneseq
        %v2441 = vshrl.u32 %v2440, 7
        %v2442 = vsub.s32 %v2439, %v2441
        %v2443 = vrot.slane %v2429, %v2442
        %v2444 = vcombine.low %v2436, %v2443
        %v2445 = vcombine.low %v2216, %v2217
        %v2447 = vunpack.c.l.s4 1983009808
        %v2448 = vunpack.c.0.s8 %v2447
        %v2449 = vlaneseq
        %v2450 = vshrl.u32 %v2449, 7
        %v2451 = vsub.s32 %v2448, %v2450
        %v2452 = vrot.slane %v2445, %v2451
        %v2454 = vunpack.c.l.s4 1983009808
        %v2455 = vunpack.c.0.s8 %v2454
        %v2456 = vlaneseq
        %v2457 = vshrl.u32 %v2456, 7
        %v2458 = vsub.s32 %v2455, %v2457
        %v2459 = vrot.slane %v2218, %v2458
        %v2460 = vcombine.low %v2452, %v2459
        %v2461 = vcombine.low %v2219, %v2220
        %v2462 = vcombine.low %v2221, %v2222
        %v2464 = vunpack.c.l.s4 1983009808
        %v2465 = vunpack.c.0.s8 %v2464
        %v2466 = vlaneseq
        %v2467 = vshrl.u32 %v2466, 7
        %v2468 = vsub.s32 %v2465, %v2467
        %v2469 = vrot.slane %v2461, %v2468
        %v2471 = vunpack.c.l.s4 1983009808
        %v2472 = vunpack.c.0.s8 %v2471
        %v2473 = vlaneseq
        %v2474 = vshrl.u32 %v2473, 7
        %v2475 = vsub.s32 %v2472, %v2474
        %v2476 = vrot.slane %v2462, %v2475
        %v2477 = vcombine.low %v2469, %v2476
        %v2478 = vcombine.low %v2223, %v2224
        %v2480 = vunpack.c.l.s4 1983009808
        %v2481 = vunpack.c.0.s8 %v2480
        %v2482 = vlaneseq
        %v2483 = vshrl.u32 %v2482, 7
        %v2484 = vsub.s32 %v2481, %v2483
        %v2485 = vrot.slane %v2478, %v2484
        %v2487 = vunpack.c.l.s4 1983009808
        %v2488 = vunpack.c.0.s8 %v2487
        %v2489 = vlaneseq
        %v2490 = vshrl.u32 %v2489, 7
        %v2491 = vsub.s32 %v2488, %v2490
        %v2492 = vrot.slane %v2225, %v2491
        %v2493 = vcombine.low %v2485, %v2492
        %v2494 = vcombine.low %v2226, %v2227
        %v2495 = vcombine.low %v2228, %v2229
        %v2497 = vunpack.c.l.s4 1983009808
        %v2498 = vunpack.c.0.s8 %v2497
        %v2499 = vlaneseq
        %v2500 = vshrl.u32 %v2499, 7
        %v2501 = vsub.s32 %v2498, %v2500
        %v2502 = vrot.slane %v2494, %v2501
        %v2504 = vunpack.c.l.s4 1983009808
        %v2505 = vunpack.c.0.s8 %v2504
        %v2506 = vlaneseq
        %v2507 = vshrl.u32 %v2506, 7
        %v2508 = vsub.s32 %v2505, %v2507
        %v2509 = vrot.slane %v2495, %v2508
        %v2510 = vcombine.low %v2502, %v2509
        %v2511 = vcombine.low %v2230, %v2231
        %v2513 = vunpack.c.l.s4 1983009808
        %v2514 = vunpack.c.0.s8 %v2513
        %v2515 = vlaneseq
        %v2516 = vshrl.u32 %v2515, 7
        %v2517 = vsub.s32 %v2514, %v2516
        %v2518 = vrot.slane %v2511, %v2517
        %v2520 = vunpack.c.l.s4 1983009808
        %v2521 = vunpack.c.0.s8 %v2520
        %v2522 = vlaneseq
        %v2523 = vshrl.u32 %v2522, 7
        %v2524 = vsub.s32 %v2521, %v2523
        %v2525 = vrot.slane %v2232, %v2524
        %v2526 = vcombine.low %v2518, %v2525
        %v2527 = vcombine.low %v2233, %v2234
        %v2528 = vcombine.low %v2235, %v2236
        %v2530 = vunpack.c.l.s4 1983009808
        %v2531 = vunpack.c.0.s8 %v2530
        %v2532 = vlaneseq
        %v2533 = vshrl.u32 %v2532, 7
        %v2534 = vsub.s32 %v2531, %v2533
        %v2535 = vrot.slane %v2527, %v2534
        %v2537 = vunpack.c.l.s4 1983009808
        %v2538 = vunpack.c.0.s8 %v2537
        %v2539 = vlaneseq
        %v2540 = vshrl.u32 %v2539, 7
        %v2541 = vsub.s32 %v2538, %v2540
        %v2542 = vrot.slane %v2528, %v2541
        %v2543 = vcombine.low %v2535, %v2542
        %v2544 = vcombine.low %v2237, %v2238
        %v2546 = vunpack.c.l.s4 1983009808
        %v2547 = vunpack.c.0.s8 %v2546
        %v2548 = vlaneseq
        %v2549 = vshrl.u32 %v2548, 7
        %v2550 = vsub.s32 %v2547, %v2549
        %v2551 = vrot.slane %v2544, %v2550
        %v2553 = vunpack.c.l.s4 1983009808
        %v2554 = vunpack.c.0.s8 %v2553
        %v2555 = vlaneseq
        %v2556 = vshrl.u32 %v2555, 7
        %v2557 = vsub.s32 %v2554, %v2556
        %v2558 = vrot.slane %v2239, %v2557
        %v2559 = vcombine.low %v2551, %v2558
        %vm2576 = vcmask 1045504
        %v2577 = vsel %vm2576, %v2328, 0.0
        %v2578 = vadd.f32 %v2312, %v2577
        %v2579 = vrot.slane %v2578, 4
        %v2580 = vadd.f32 %v2578, %v2579
        %v2581 = vrot.slane %v2580, 2
        %v2582 = vadd.f32 %v2580, %v2581
        %v2583 = vrot.slane %v2582, 1
        %v2584 = vadd.f32 %v2582, %v2583
        %v2585 = vsel %vm2576, %v2361, 0.0
        %v2586 = vadd.f32 %v2345, %v2585
        %v2587 = vrot.slane %v2586, 4
        %v2588 = vadd.f32 %v2586, %v2587
        %v2589 = vrot.slane %v2588, 2
        %v2590 = vadd.f32 %v2588, %v2589
        %v2591 = vrot.slane %v2590, 1
        %v2592 = vadd.f32 %v2590, %v2591
        %v2593 = vsel %vm2576, %v2394, 0.0
        %v2594 = vadd.f32 %v2378, %v2593
        %v2595 = vrot.slane %v2594, 4
        %v2596 = vadd.f32 %v2594, %v2595
        %v2597 = vrot.slane %v2596, 2
        %v2598 = vadd.f32 %v2596, %v2597
        %v2599 = vrot.slane %v2598, 1
        %v2600 = vadd.f32 %v2598, %v2599
        %v2601 = vsel %vm2576, %v2427, 0.0
        %v2602 = vadd.f32 %v2411, %v2601
        %v2603 = vrot.slane %v2602, 4
        %v2604 = vadd.f32 %v2602, %v2603
        %v2605 = vrot.slane %v2604, 2
        %v2606 = vadd.f32 %v2604, %v2605
        %v2607 = vrot.slane %v2606, 1
        %v2608 = vadd.f32 %v2606, %v2607
        %v2609 = vsel %vm2576, %v2460, 0.0
        %v2610 = vadd.f32 %v2444, %v2609
        %v2611 = vrot.slane %v2610, 4
        %v2612 = vadd.f32 %v2610, %v2611
        %v2613 = vrot.slane %v2612, 2
        %v2614 = vadd.f32 %v2612, %v2613
        %v2615 = vrot.slane %v2614, 1
        %v2616 = vadd.f32 %v2614, %v2615
        %v2617 = vsel %vm2576, %v2493, 0.0
        %v2618 = vadd.f32 %v2477, %v2617
        %v2619 = vrot.slane %v2618, 4
        %v2620 = vadd.f32 %v2618, %v2619
        %v2621 = vrot.slane %v2620, 2
        %v2622 = vadd.f32 %v2620, %v2621
        %v2623 = vrot.slane %v2622, 1
        %v2624 = vadd.f32 %v2622, %v2623
        %v2625 = vsel %vm2576, %v2526, 0.0
        %v2626 = vadd.f32 %v2510, %v2625
        %v2627 = vrot.slane %v2626, 4
        %v2628 = vadd.f32 %v2626, %v2627
        %v2629 = vrot.slane %v2628, 2
        %v2630 = vadd.f32 %v2628, %v2629
        %v2631 = vrot.slane %v2630, 1
        %v2632 = vadd.f32 %v2630, %v2631
        %v2633 = vsel %vm2576, %v2559, 0.0
        %v2634 = vadd.f32 %v2543, %v2633
        %v2635 = vrot.slane %v2634, 4
        %v2636 = vadd.f32 %v2634, %v2635
        %v2637 = vrot.slane %v2636, 2
        %v2638 = vadd.f32 %v2636, %v2637
        %v2639 = vrot.slane %v2638, 1
        %v2640 = vadd.f32 %v2638, %v2639
        %v2649 = vsel %vm683, %v2592, %v2584
        %v2650 = vsel %vm685, %v2600, %v2649
        %v2651 = vsel %vm687, %v2608, %v2650
        %v2652 = vsel %vm689, %v2616, %v2651
        %v2653 = vsel %vm691, %v2624, %v2652
        %v2654 = vsel %vm693, %v2632, %v2653
        %vm2655 = vcmask 1047559
        %v2656 = vsel %vm2655, %v2640, %v2654
        %2658 = vst [vmem:[%s264] sm:$0xff] %v2656
        %s2659 = sand.u32 %s165, 1
        %s2660 = scalar_lea.sflag [#allocation4], %s2659
        %s2661 = sand.u32 %s165, 1
        %s2662 = smul.addr %s2661, 8
        %s2663 = scalar_lea.vmem [#allocation3], %s2662
        // Predicated region
        $region45: #{tpu_custom_call.1} parent=43 // pred_check
          %p2664 = pneg %p175
        $region46: #{tpu_custom_call.1} parent=43 // pred_check_branch
          %2666 = sbr.rel (%p2664) target = $region48
        $region47: #{tpu_custom_call.1} parent=43 // pred_region
          %s2668 = ssub.s32 128, 128
          %2669 = vsyncadd %s2660, %s2668
          %s2670 = smul.addr %s21, 128
          %s2671 = scalar_lea.hbm %s6, %s2670
          %s2673 = sshll.u32 %s2663, 4
          %s2674 = int_to_ptr.vmem [resolvable:$true] %s2673
          %2676 = dma.vmem_to_hbm [thread:$0]  %s2674, 128, %s2671, %s2660
        $region48: #{tpu_custom_call.1} parent=43 // pred_fallthru
          _
      $region44: #{tpu_custom_call.1} parent=5 // pred_fallthru
        _
      %p2677 = scmp.le.s32.totalorder 2, %s16
      // Predicated region
      $region49: #{tpu_custom_call.1} parent=5 // pred_check
        %p2678 = pneg %p2677
      $region50: #{tpu_custom_call.1} parent=5 // pred_check_branch
        %2680 = sbr.rel (%p2678) target = $region52
      $region51: #{tpu_custom_call.1} parent=5 // pred_region
        %s2681 = ssub.s32 %s16, 2
        // Predicated region
        $region53: #{tpu_custom_call.1} parent=51 // pred_check
          %p2682 = pneg %p181
        $region54: #{tpu_custom_call.1} parent=51 // pred_check_branch
          %2684 = sbr.rel (%p2682) target = $region56
        $region55: #{tpu_custom_call.1} parent=51 // pred_region
          %s2685 = sand.u32 %s166, 1
          %s2686 = scalar_lea.sflag [#allocation4], %s2685
          %s2687 = sand.u32 %s166, 1
          %s2688 = smul.addr %s2687, 8
          %s2689 = scalar_lea.vmem [#allocation3], %s2688
          %2690 = dma.done %s2686, 128
        $region56: #{tpu_custom_call.1} parent=51 // pred_fallthru
          _
      $region52: #{tpu_custom_call.1} parent=5 // pred_fallthru
        _
    $region6: #{tpu_custom_call.1} parent=1 // loop_footer
      %s20 = sadd.s32 1, %s16
    $region7: #{tpu_custom_call.1} parent=1 // loop_footer_branch
      %15 = sbr.rel target = $region3
    $region8: #{tpu_custom_call.1} parent=1 // loop_exit
      _
    %2691 = vsyncpa [#allocation4], 1
    %s2692 = scalar_lea.sflag [#allocation4], 1
    %2693 = vsyncpa %s2692, 1

</llo_original>
